<compile_context>
chip_gen: v7x
topology: tpu7x:2x2x1
jax: 0.10.0
libtpu: 0.0.40
codegen_flags: <defaults>
</compile_context>

<pallas_src>
import jax
import jax.numpy as jnp
from jax.experimental import pallas as pl
from jax.experimental.pallas import tpu as pltpu


def bilstm_fused_kernel(xa_ref, w_in_ref, b_in_ref, w_hh_ref, mult_ref, off_ref,
                        fcw_ref, fcb_ref, lstm_out_ref, out_ref, xp_scr):
    """Whole bidirectional LSTM + last-step Linear + Sigmoid, one invocation.

    Shapes (all static):
      xa_ref:       (T*B, 2D)  time-major augmented input: row block t = [x(t)|x(T-1-t)]
      w_in_ref:     (2D, 8H)   block input weights, gate-major cols [i_f|i_b|f_f|f_b|g_f|g_b|o_f|o_b]
      b_in_ref:     (1, 8H)    (b_ih + b_hh), both directions, same column order
      w_hh_ref:     (2H, 8H)   block-diagonal recurrent weights ([h_f|h_b] @ w_hh)
      mult/off_ref: (1, 8H)    recover sigmoid(i/f/o) / tanh(g) from one tanh
      fcw_ref:      (2H, O)    fc weight ;  fcb_ref: (1, O)
      lstm_out_ref: (B, T, 2H) batch-first hidden states (what get_pre_activation_features returns)
      out_ref:      (B, O)     sigmoid(fc(lstm_out[:, -1, :]))
      xp_scr:       (T*B, 8H)  VMEM scratch: precomputed, time-aligned input projections
    """
    B, T, H2 = lstm_out_ref.shape
    H = H2 // 2

    # --- (1) all input projections, both directions, one MXU call -----------
    xp_scr[...] = (jnp.dot(xa_ref[...], w_in_ref[...],
                           preferred_element_type=jnp.float32) + b_in_ref[...])

    w_hh = w_hh_ref[...]                                    # (2H, 8H), resident
    mult = jnp.broadcast_to(mult_ref[...], (B, 8 * H))      # hoisted out of loop
    off = jnp.broadcast_to(off_ref[...], (B, 8 * H))

    h_cat = jnp.zeros((B, 2 * H), jnp.float32)              # [h_fwd | h_bwd]
    c_cat = jnp.zeros((B, 2 * H), jnp.float32)
    hf = []        # hf[t] = forward hidden at time t
    hb = {}        # hb[t] = backward hidden at time t

    # --- (2) fully unrolled recurrence: ONE matmul + ONE gate tanh per step --
    for s in range(T):
        pre = xp_scr[s * B:(s + 1) * B, :] + jnp.dot(
            h_cat, w_hh, preferred_element_type=jnp.float32)           # (B, 8H)
        # i/f/o columns were pre-scaled by 0.5 -> one tanh gives every gate.
        act = jnp.tanh(pre) * mult + off
        i = act[:, 0 * H:2 * H]        # [i_f | i_b]
        f = act[:, 2 * H:4 * H]        # [f_f | f_b]
        g = act[:, 4 * H:6 * H]        # [g_f | g_b]
        o = act[:, 6 * H:8 * H]        # [o_f | o_b]
        c_cat = f * c_cat + i * g                      # packed 64-lane elementwise
        h_cat = o * jnp.tanh(c_cat)
        hf.append(h_cat[:, :H])
        hb[T - 1 - s] = h_cat[:, H:]

    # --- (3) lane-dense (64-lane) batch-first writeback of lstm_out ---------
    for t in range(T):
        row = jnp.concatenate([hf[t], hb[t]], axis=-1)                 # (B, 2H)
        lstm_out_ref[:, t:t + 1, :] = row.reshape(B, 1, 2 * H)

    # --- (4) fused Linear + Sigmoid on lstm_out[:, -1, :] -------------------
    # hb[T-1] is the backward state after seeing only x[T-1] (== PyTorch
    # output[:, -1, H:], NOT h_n) -- intentional.
    last = jnp.concatenate([hf[T - 1], hb[T - 1]], axis=-1)            # (B, 2H)
    logits = (jnp.dot(last, fcw_ref[...], preferred_element_type=jnp.float32)
              + fcb_ref[...])
    out_ref[...] = 0.5 * jnp.tanh(0.5 * logits) + 0.5                  # sigmoid


@jax.jit
def bilstm_forward(x, params):
    """x: (B, T, D) float32, batch_first like the PyTorch module."""
    B, T, D = x.shape
    H = params["whh_f"].shape[0]
    O = params["fc_w"].shape[1]
    f32 = jnp.float32

    # tanh trick: sigmoid(z) = 0.5*tanh(0.5 z)+0.5 -> pre-scale i/f/o cols by 0.5.
    gate_scale = jnp.repeat(jnp.array([0.5, 0.5, 1.0, 0.5], f32), H)   # i,f,g,o

    def pack_dirs(wf, wb):
        # (R,4H) fwd + (R,4H) bwd -> (R,8H) gate-major interleaved columns
        # [i_f|i_b|f_f|f_b|g_f|g_b|o_f|o_b], prescaled for the single-tanh trick.
        R = wf.shape[0]
        wf = (wf.astype(f32) * gate_scale).reshape(R, 4, H)
        wb = (wb.astype(f32) * gate_scale).reshape(R, 4, H)
        return jnp.stack([wf, wb], axis=2).reshape(R, 8 * H)

    zD = jnp.zeros((D, 4 * H), f32)
    zH = jnp.zeros((H, 4 * H), f32)
    # input weights: rows 0:D act on x(t) (fwd cols), rows D:2D on x(T-1-t) (bwd cols)
    w_in = jnp.concatenate([pack_dirs(params["wih_f"], zD),
                            pack_dirs(zD, params["wih_b"])], axis=0)   # (2D, 8H)
    # block-diagonal recurrent weights: [h_f | h_b] @ w_hh hits both dirs at once
    w_hh = jnp.concatenate([pack_dirs(params["whh_f"], zH),
                            pack_dirs(zH, params["whh_b"])], axis=0)   # (2H, 8H)
    b_in = pack_dirs(params["b_f"], params["b_b"])                     # (1, 8H)
    # recover sigmoid (i/f/o) and tanh (g) from the single tanh: act = tanh*mult+off
    mult = jnp.repeat(jnp.array([0.5, 0.5, 1.0, 0.5], f32), 2 * H).reshape(1, 8 * H)
    off = jnp.repeat(jnp.array([0.5, 0.5, 0.0, 0.5], f32), 2 * H).reshape(1, 8 * H)

    # time-aligned augmented input: row block t = [x(t) | x(T-1-t)]
    x_tm = jnp.transpose(x.astype(f32), (1, 0, 2))                     # (T, B, D)
    x_aug = jnp.concatenate([x_tm, x_tm[::-1]], axis=-1).reshape(T * B, 2 * D)

    fc_w = params["fc_w"].astype(f32)     # (2H, O); lane order matches [h_f | h_b]
    fc_b = params["fc_b"].astype(f32)

    # All-resident VMEM budget (inputs + scratch + outputs). Trivial here (~200 KB).
    # TODO(synk): if T/B/H grow, tile T with an 'arbitrary' grid axis (constant
    # index_map for weights) and set pltpu.CompilerParams(vmem_limit_bytes=...);
    # v7x has only 64 MiB physical VMEM vs 128 MiB on v5e/v6e.
    resident = 4 * (T * B * 2 * D + 2 * D * 8 * H + 3 * 8 * H + 2 * H * 8 * H
                    + 2 * H * O + O + B * T * 2 * H + B * O + T * B * 8 * H)
    assert resident < 8 * 1024 * 1024

    cost = pl.CostEstimate(
        flops=(2 * (T * B) * (2 * D) * (8 * H)          # input projections
               + T * 2 * B * (2 * H) * (8 * H)          # recurrence
               + 2 * B * (2 * H) * O),                  # fc head
        transcendentals=T * B * (8 * H + 2 * H) + B * O,
        bytes_accessed=resident,
    )

    vmem = pl.BlockSpec(memory_space=pltpu.MemorySpace.VMEM)
    lstm_out, out = pl.pallas_call(
        bilstm_fused_kernel,
        out_shape=(jax.ShapeDtypeStruct((B, T, 2 * H), f32),
                   jax.ShapeDtypeStruct((B, O), f32)),
        in_specs=[vmem] * 8,
        out_specs=(vmem, vmem),
        scratch_shapes=[pltpu.VMEM((T * B, 8 * H), f32)],
        cost_estimate=cost,
    )(x_aug, w_in, b_in, w_hh, mult, off, fc_w, fc_b)

    # Dropout: eval-mode identity.
    # TODO(synk): training-mode dropout would need pltpu.prng_* inside the kernel.
    return out, lstm_out


def make_params(key, input_dim, hidden_dim, output_dim):
    """Deterministic init, PyTorch-style uniform(-1/sqrt(H), 1/sqrt(H))."""
    H, D = hidden_dim, input_dim
    k = 1.0 / jnp.sqrt(jnp.float32(H))
    keys = jax.random.split(key, 10)
    u = lambda kk, shape: jax.random.uniform(kk, shape, jnp.float32, -k, k)
    # weights stored pre-transposed: (in_features, 4H) so kernels do x @ W
    return dict(
        wih_f=u(keys[0], (D, 4 * H)),
        whh_f=u(keys[1], (H, 4 * H)),
        b_f=(u(keys[2], (1, 4 * H)) + u(keys[3], (1, 4 * H))),  # b_ih + b_hh
        wih_b=u(keys[4], (D, 4 * H)),
        whh_b=u(keys[5], (H, 4 * H)),
        b_b=(u(keys[6], (1, 4 * H)) + u(keys[7], (1, 4 * H))),
        fc_w=u(keys[8], (2 * H, output_dim)),
        fc_b=u(keys[9], (1, output_dim)),
    )


def _reference_forward(x, params):
    """Pure-JAX reference (lax.scan) with identical semantics."""
    B, T, D = x.shape
    H = params["whh_f"].shape[0]

    def cell(carry, xt, wih, whh, b):
        h, c = carry
        gates = xt @ wih + h @ whh + b
        i = jax.nn.sigmoid(gates[:, 0 * H:1 * H])
        f = jax.nn.sigmoid(gates[:, 1 * H:2 * H])
        g = jnp.tanh(gates[:, 2 * H:3 * H])
        o = jax.nn.sigmoid(gates[:, 3 * H:4 * H])
        c = f * c + i * g
        h = o * jnp.tanh(c)
        return (h, c), h

    x_tm = jnp.transpose(x, (1, 0, 2))
    init = (jnp.zeros((B, H), jnp.float32), jnp.zeros((B, H), jnp.float32))
    _, hs_f = jax.lax.scan(
        lambda cr, xt: cell(cr, xt, params["wih_f"], params["whh_f"], params["b_f"]),
        init, x_tm)
    _, hs_b = jax.lax.scan(
        lambda cr, xt: cell(cr, xt, params["wih_b"], params["whh_b"], params["b_b"]),
        init, x_tm[::-1])
    hs_b = hs_b[::-1]
    lstm_out = jnp.transpose(jnp.concatenate([hs_f, hs_b], axis=-1), (1, 0, 2))
    last = lstm_out[:, -1, :]
    return jax.nn.sigmoid(last @ params["fc_w"] + params["fc_b"]), lstm_out


if __name__ == "__main__":
    # Small shapes consistent with the module: batch=2, seq=8, input_dim=16,
    # hidden_dim=32, output_dim=1.
    B, T, D, H, O = 2, 8, 16, 32, 1

    key = jax.random.PRNGKey(0)
    kx, kp = jax.random.split(key)
    x = jax.random.normal(kx, (B, T, D), jnp.float32)
    params = make_params(kp, D, H, O)

    out, lstm_out = bilstm_forward(x, params)
    out = jax.block_until_ready(out)
    lstm_out = jax.block_until_ready(lstm_out)

    ref_out, ref_lstm_out = _reference_forward(x, params)
    assert out.shape == (B, O)
    assert lstm_out.shape == (B, T, 2 * H)
    assert jnp.allclose(out, ref_out, atol=1e-4, rtol=1e-4)
    assert jnp.allclose(lstm_out, ref_lstm_out, atol=1e-4, rtol=1e-4)

    print("KERNEL_OK")
</pallas_src>

<mosaic_0001>
module attributes {stable_mosaic.version = 11 : i64} {
  func.func @bilstm_fused_kernel(%arg0: memref<16x32xf32, #tpu.memory_space<vmem>>, %arg1: memref<32x256xf32, #tpu.memory_space<vmem>>, %arg2: memref<1x256xf32, #tpu.memory_space<vmem>>, %arg3: memref<64x256xf32, #tpu.memory_space<vmem>>, %arg4: memref<1x256xf32, #tpu.memory_space<vmem>>, %arg5: memref<1x256xf32, #tpu.memory_space<vmem>>, %arg6: memref<64x1xf32, #tpu.memory_space<vmem>>, %arg7: memref<1x1xf32, #tpu.memory_space<vmem>>, %arg8: memref<2x8x64xf32, #tpu.memory_space<vmem>>, %arg9: memref<2x1xf32, #tpu.memory_space<vmem>>, %arg10: memref<16x256xf32, #tpu.memory_space<vmem>>) attributes {dimension_semantics = [], scalar_prefetch = 0 : i64, scratch_operands = 1 : i64, tpu.core_type = #tpu.core_type<tc>} {
    %c0 = arith.constant 0 : index
    %c0_0 = arith.constant 0 : index
    %0 = vector.load %arg0[%c0, %c0_0] : memref<16x32xf32, #tpu.memory_space<vmem>>, vector<16x32xf32>
    %c0_1 = arith.constant 0 : index
    %c0_2 = arith.constant 0 : index
    %1 = vector.load %arg1[%c0_1, %c0_2] : memref<32x256xf32, #tpu.memory_space<vmem>>, vector<32x256xf32>
    %cst = arith.constant dense<0.000000e+00> : vector<16x256xf32>
    %2 = tpu.matmul %0, %1, %cst {dimension_numbers = #tpu.dot_dimension_numbers<[1], [0], [0], [1], [0, 0, 1, 1], [], []>} : vector<16x32xf32>, vector<32x256xf32>, vector<16x256xf32> -> vector<16x256xf32>
    %c0_3 = arith.constant 0 : index
    %c0_4 = arith.constant 0 : index
    %3 = vector.load %arg2[%c0_3, %c0_4] : memref<1x256xf32, #tpu.memory_space<vmem>>, vector<1x256xf32>
    %4 = vector.broadcast %3 : vector<1x256xf32> to vector<16x256xf32>
    %5 = arith.addf %2, %4 : vector<16x256xf32>
    %c0_5 = arith.constant 0 : index
    %c0_6 = arith.constant 0 : index
    %6 = vector.load %arg10[%c0_5, %c0_6] : memref<16x256xf32, #tpu.memory_space<vmem>>, vector<16x256xf32>
    tpu.vector_store %arg10[%c0_5, %c0_6], %5 {strides = array<i32>} : memref<16x256xf32, #tpu.memory_space<vmem>>, vector<16x256xf32>,
    %c0_7 = arith.constant 0 : index
    %c0_8 = arith.constant 0 : index
    %7 = vector.load %arg3[%c0_7, %c0_8] : memref<64x256xf32, #tpu.memory_space<vmem>>, vector<64x256xf32>
    %c0_9 = arith.constant 0 : index
    %c0_10 = arith.constant 0 : index
    %8 = vector.load %arg4[%c0_9, %c0_10] : memref<1x256xf32, #tpu.memory_space<vmem>>, vector<1x256xf32>
    %9 = vector.shape_cast %8 : vector<1x256xf32> to vector<1x256xf32>
    %10 = vector.broadcast %9 : vector<1x256xf32> to vector<2x256xf32>
    %c0_11 = arith.constant 0 : index
    %c0_12 = arith.constant 0 : index
    %11 = vector.load %arg5[%c0_11, %c0_12] : memref<1x256xf32, #tpu.memory_space<vmem>>, vector<1x256xf32>
    %12 = vector.shape_cast %11 : vector<1x256xf32> to vector<1x256xf32>
    %13 = vector.broadcast %12 : vector<1x256xf32> to vector<2x256xf32>
    %cst_13 = arith.constant 0.000000e+00 : f32
    %14 = vector.broadcast %cst_13 : f32 to vector<2x64xf32>
    %cst_14 = arith.constant 0.000000e+00 : f32
    %15 = vector.broadcast %cst_14 : f32 to vector<2x64xf32>
    %c0_15 = arith.constant 0 : index
    %c0_16 = arith.constant 0 : index
    %16 = vector.load %arg10[%c0_15, %c0_16] : memref<16x256xf32, #tpu.memory_space<vmem>>, vector<2x256xf32>
    %cst_17 = arith.constant dense<0.000000e+00> : vector<2x256xf32>
    %17 = tpu.matmul %14, %7, %cst_17 {dimension_numbers = #tpu.dot_dimension_numbers<[1], [0], [0], [1], [0, 0, 1, 1], [], []>} : vector<2x64xf32>, vector<64x256xf32>, vector<2x256xf32> -> vector<2x256xf32>
    %18 = arith.addf %16, %17 : vector<2x256xf32>
    %19 = math.tanh %18 : vector<2x256xf32>
    %20 = arith.mulf %19, %10 : vector<2x256xf32>
    %21 = arith.addf %20, %13 : vector<2x256xf32>
    %22 = vector.extract_strided_slice %21 {offsets = [0, 0], sizes = [2, 64], strides = [1, 1]} : vector<2x256xf32> to vector<2x64xf32>
    %23 = vector.extract_strided_slice %21 {offsets = [0, 64], sizes = [2, 64], strides = [1, 1]} : vector<2x256xf32> to vector<2x64xf32>
    %24 = vector.extract_strided_slice %21 {offsets = [0, 128], sizes = [2, 64], strides = [1, 1]} : vector<2x256xf32> to vector<2x64xf32>
    %25 = vector.extract_strided_slice %21 {offsets = [0, 192], sizes = [2, 64], strides = [1, 1]} : vector<2x256xf32> to vector<2x64xf32>
    %26 = arith.mulf %23, %15 : vector<2x64xf32>
    %27 = arith.mulf %22, %24 : vector<2x64xf32>
    %28 = arith.addf %26, %27 : vector<2x64xf32>
    %29 = math.tanh %28 : vector<2x64xf32>
    %30 = arith.mulf %25, %29 : vector<2x64xf32>
    %31 = vector.extract_strided_slice %30 {offsets = [0, 0], sizes = [2, 32], strides = [1, 1]} : vector<2x64xf32> to vector<2x32xf32>
    %32 = vector.extract_strided_slice %30 {offsets = [0, 32], sizes = [2, 32], strides = [1, 1]} : vector<2x64xf32> to vector<2x32xf32>
    %c2 = arith.constant 2 : index
    %c0_18 = arith.constant 0 : index
    %33 = vector.load %arg10[%c2, %c0_18] : memref<16x256xf32, #tpu.memory_space<vmem>>, vector<2x256xf32>
    %cst_19 = arith.constant dense<0.000000e+00> : vector<2x256xf32>
    %34 = tpu.matmul %30, %7, %cst_19 {dimension_numbers = #tpu.dot_dimension_numbers<[1], [0], [0], [1], [0, 0, 1, 1], [], []>} : vector<2x64xf32>, vector<64x256xf32>, vector<2x256xf32> -> vector<2x256xf32>
    %35 = arith.addf %33, %34 : vector<2x256xf32>
    %36 = math.tanh %35 : vector<2x256xf32>
    %37 = arith.mulf %36, %10 : vector<2x256xf32>
    %38 = arith.addf %37, %13 : vector<2x256xf32>
    %39 = vector.extract_strided_slice %38 {offsets = [0, 0], sizes = [2, 64], strides = [1, 1]} : vector<2x256xf32> to vector<2x64xf32>
    %40 = vector.extract_strided_slice %38 {offsets = [0, 64], sizes = [2, 64], strides = [1, 1]} : vector<2x256xf32> to vector<2x64xf32>
    %41 = vector.extract_strided_slice %38 {offsets = [0, 128], sizes = [2, 64], strides = [1, 1]} : vector<2x256xf32> to vector<2x64xf32>
    %42 = vector.extract_strided_slice %38 {offsets = [0, 192], sizes = [2, 64], strides = [1, 1]} : vector<2x256xf32> to vector<2x64xf32>
    %43 = arith.mulf %40, %28 : vector<2x64xf32>
    %44 = arith.mulf %39, %41 : vector<2x64xf32>
    %45 = arith.addf %43, %44 : vector<2x64xf32>
    %46 = math.tanh %45 : vector<2x64xf32>
    %47 = arith.mulf %42, %46 : vector<2x64xf32>
    %48 = vector.extract_strided_slice %47 {offsets = [0, 0], sizes = [2, 32], strides = [1, 1]} : vector<2x64xf32> to vector<2x32xf32>
    %49 = vector.extract_strided_slice %47 {offsets = [0, 32], sizes = [2, 32], strides = [1, 1]} : vector<2x64xf32> to vector<2x32xf32>
    %c4 = arith.constant 4 : index
    %c0_20 = arith.constant 0 : index
    %50 = vector.load %arg10[%c4, %c0_20] : memref<16x256xf32, #tpu.memory_space<vmem>>, vector<2x256xf32>
    %cst_21 = arith.constant dense<0.000000e+00> : vector<2x256xf32>
    %51 = tpu.matmul %47, %7, %cst_21 {dimension_numbers = #tpu.dot_dimension_numbers<[1], [0], [0], [1], [0, 0, 1, 1], [], []>} : vector<2x64xf32>, vector<64x256xf32>, vector<2x256xf32> -> vector<2x256xf32>
    %52 = arith.addf %50, %51 : vector<2x256xf32>
    %53 = math.tanh %52 : vector<2x256xf32>
    %54 = arith.mulf %53, %10 : vector<2x256xf32>
    %55 = arith.addf %54, %13 : vector<2x256xf32>
    %56 = vector.extract_strided_slice %55 {offsets = [0, 0], sizes = [2, 64], strides = [1, 1]} : vector<2x256xf32> to vector<2x64xf32>
    %57 = vector.extract_strided_slice %55 {offsets = [0, 64], sizes = [2, 64], strides = [1, 1]} : vector<2x256xf32> to vector<2x64xf32>
    %58 = vector.extract_strided_slice %55 {offsets = [0, 128], sizes = [2, 64], strides = [1, 1]} : vector<2x256xf32> to vector<2x64xf32>
    %59 = vector.extract_strided_slice %55 {offsets = [0, 192], sizes = [2, 64], strides = [1, 1]} : vector<2x256xf32> to vector<2x64xf32>
    %60 = arith.mulf %57, %45 : vector<2x64xf32>
    %61 = arith.mulf %56, %58 : vector<2x64xf32>
    %62 = arith.addf %60, %61 : vector<2x64xf32>
    %63 = math.tanh %62 : vector<2x64xf32>
    %64 = arith.mulf %59, %63 : vector<2x64xf32>
    %65 = vector.extract_strided_slice %64 {offsets = [0, 0], sizes = [2, 32], strides = [1, 1]} : vector<2x64xf32> to vector<2x32xf32>
    %66 = vector.extract_strided_slice %64 {offsets = [0, 32], sizes = [2, 32], strides = [1, 1]} : vector<2x64xf32> to vector<2x32xf32>
    %c6 = arith.constant 6 : index
    %c0_22 = arith.constant 0 : index
    %67 = vector.load %arg10[%c6, %c0_22] : memref<16x256xf32, #tpu.memory_space<vmem>>, vector<2x256xf32>
    %cst_23 = arith.constant dense<0.000000e+00> : vector<2x256xf32>
    %68 = tpu.matmul %64, %7, %cst_23 {dimension_numbers = #tpu.dot_dimension_numbers<[1], [0], [0], [1], [0, 0, 1, 1], [], []>} : vector<2x64xf32>, vector<64x256xf32>, vector<2x256xf32> -> vector<2x256xf32>
    %69 = arith.addf %67, %68 : vector<2x256xf32>
    %70 = math.tanh %69 : vector<2x256xf32>
    %71 = arith.mulf %70, %10 : vector<2x256xf32>
    %72 = arith.addf %71, %13 : vector<2x256xf32>
    %73 = vector.extract_strided_slice %72 {offsets = [0, 0], sizes = [2, 64], strides = [1, 1]} : vector<2x256xf32> to vector<2x64xf32>
    %74 = vector.extract_strided_slice %72 {offsets = [0, 64], sizes = [2, 64], strides = [1, 1]} : vector<2x256xf32> to vector<2x64xf32>
    %75 = vector.extract_strided_slice %72 {offsets = [0, 128], sizes = [2, 64], strides = [1, 1]} : vector<2x256xf32> to vector<2x64xf32>
    %76 = vector.extract_strided_slice %72 {offsets = [0, 192], sizes = [2, 64], strides = [1, 1]} : vector<2x256xf32> to vector<2x64xf32>
    %77 = arith.mulf %74, %62 : vector<2x64xf32>
    %78 = arith.mulf %73, %75 : vector<2x64xf32>
    %79 = arith.addf %77, %78 : vector<2x64xf32>
    %80 = math.tanh %79 : vector<2x64xf32>
    %81 = arith.mulf %76, %80 : vector<2x64xf32>
    %82 = vector.extract_strided_slice %81 {offsets = [0, 0], sizes = [2, 32], strides = [1, 1]} : vector<2x64xf32> to vector<2x32xf32>
    %83 = vector.extract_strided_slice %81 {offsets = [0, 32], sizes = [2, 32], strides = [1, 1]} : vector<2x64xf32> to vector<2x32xf32>
    %c8 = arith.constant 8 : index
    %c0_24 = arith.constant 0 : index
    %84 = vector.load %arg10[%c8, %c0_24] : memref<16x256xf32, #tpu.memory_space<vmem>>, vector<2x256xf32>
    %cst_25 = arith.constant dense<0.000000e+00> : vector<2x256xf32>
    %85 = tpu.matmul %81, %7, %cst_25 {dimension_numbers = #tpu.dot_dimension_numbers<[1], [0], [0], [1], [0, 0, 1, 1], [], []>} : vector<2x64xf32>, vector<64x256xf32>, vector<2x256xf32> -> vector<2x256xf32>
    %86 = arith.addf %84, %85 : vector<2x256xf32>
    %87 = math.tanh %86 : vector<2x256xf32>
    %88 = arith.mulf %87, %10 : vector<2x256xf32>
    %89 = arith.addf %88, %13 : vector<2x256xf32>
    %90 = vector.extract_strided_slice %89 {offsets = [0, 0], sizes = [2, 64], strides = [1, 1]} : vector<2x256xf32> to vector<2x64xf32>
    %91 = vector.extract_strided_slice %89 {offsets = [0, 64], sizes = [2, 64], strides = [1, 1]} : vector<2x256xf32> to vector<2x64xf32>
    %92 = vector.extract_strided_slice %89 {offsets = [0, 128], sizes = [2, 64], strides = [1, 1]} : vector<2x256xf32> to vector<2x64xf32>
    %93 = vector.extract_strided_slice %89 {offsets = [0, 192], sizes = [2, 64], strides = [1, 1]} : vector<2x256xf32> to vector<2x64xf32>
    %94 = arith.mulf %91, %79 : vector<2x64xf32>
    %95 = arith.mulf %90, %92 : vector<2x64xf32>
    %96 = arith.addf %94, %95 : vector<2x64xf32>
    %97 = math.tanh %96 : vector<2x64xf32>
    %98 = arith.mulf %93, %97 : vector<2x64xf32>
    %99 = vector.extract_strided_slice %98 {offsets = [0, 0], sizes = [2, 32], strides = [1, 1]} : vector<2x64xf32> to vector<2x32xf32>
    %100 = vector.extract_strided_slice %98 {offsets = [0, 32], sizes = [2, 32], strides = [1, 1]} : vector<2x64xf32> to vector<2x32xf32>
    %c10 = arith.constant 10 : index
    %c0_26 = arith.constant 0 : index
    %101 = vector.load %arg10[%c10, %c0_26] : memref<16x256xf32, #tpu.memory_space<vmem>>, vector<2x256xf32>
    %cst_27 = arith.constant dense<0.000000e+00> : vector<2x256xf32>
    %102 = tpu.matmul %98, %7, %cst_27 {dimension_numbers = #tpu.dot_dimension_numbers<[1], [0], [0], [1], [0, 0, 1, 1], [], []>} : vector<2x64xf32>, vector<64x256xf32>, vector<2x256xf32> -> vector<2x256xf32>
    %103 = arith.addf %101, %102 : vector<2x256xf32>
    %104 = math.tanh %103 : vector<2x256xf32>
    %105 = arith.mulf %104, %10 : vector<2x256xf32>
    %106 = arith.addf %105, %13 : vector<2x256xf32>
    %107 = vector.extract_strided_slice %106 {offsets = [0, 0], sizes = [2, 64], strides = [1, 1]} : vector<2x256xf32> to vector<2x64xf32>
    %108 = vector.extract_strided_slice %106 {offsets = [0, 64], sizes = [2, 64], strides = [1, 1]} : vector<2x256xf32> to vector<2x64xf32>
    %109 = vector.extract_strided_slice %106 {offsets = [0, 128], sizes = [2, 64], strides = [1, 1]} : vector<2x256xf32> to vector<2x64xf32>
    %110 = vector.extract_strided_slice %106 {offsets = [0, 192], sizes = [2, 64], strides = [1, 1]} : vector<2x256xf32> to vector<2x64xf32>
    %111 = arith.mulf %108, %96 : vector<2x64xf32>
    %112 = arith.mulf %107, %109 : vector<2x64xf32>
    %113 = arith.addf %111, %112 : vector<2x64xf32>
    %114 = math.tanh %113 : vector<2x64xf32>
    %115 = arith.mulf %110, %114 : vector<2x64xf32>
    %116 = vector.extract_strided_slice %115 {offsets = [0, 0], sizes = [2, 32], strides = [1, 1]} : vector<2x64xf32> to vector<2x32xf32>
    %117 = vector.extract_strided_slice %115 {offsets = [0, 32], sizes = [2, 32], strides = [1, 1]} : vector<2x64xf32> to vector<2x32xf32>
    %c12 = arith.constant 12 : index
    %c0_28 = arith.constant 0 : index
    %118 = vector.load %arg10[%c12, %c0_28] : memref<16x256xf32, #tpu.memory_space<vmem>>, vector<2x256xf32>
    %cst_29 = arith.constant dense<0.000000e+00> : vector<2x256xf32>
    %119 = tpu.matmul %115, %7, %cst_29 {dimension_numbers = #tpu.dot_dimension_numbers<[1], [0], [0], [1], [0, 0, 1, 1], [], []>} : vector<2x64xf32>, vector<64x256xf32>, vector<2x256xf32> -> vector<2x256xf32>
    %120 = arith.addf %118, %119 : vector<2x256xf32>
    %121 = math.tanh %120 : vector<2x256xf32>
    %122 = arith.mulf %121, %10 : vector<2x256xf32>
    %123 = arith.addf %122, %13 : vector<2x256xf32>
    %124 = vector.extract_strided_slice %123 {offsets = [0, 0], sizes = [2, 64], strides = [1, 1]} : vector<2x256xf32> to vector<2x64xf32>
    %125 = vector.extract_strided_slice %123 {offsets = [0, 64], sizes = [2, 64], strides = [1, 1]} : vector<2x256xf32> to vector<2x64xf32>
    %126 = vector.extract_strided_slice %123 {offsets = [0, 128], sizes = [2, 64], strides = [1, 1]} : vector<2x256xf32> to vector<2x64xf32>
    %127 = vector.extract_strided_slice %123 {offsets = [0, 192], sizes = [2, 64], strides = [1, 1]} : vector<2x256xf32> to vector<2x64xf32>
    %128 = arith.mulf %125, %113 : vector<2x64xf32>
    %129 = arith.mulf %124, %126 : vector<2x64xf32>
    %130 = arith.addf %128, %129 : vector<2x64xf32>
    %131 = math.tanh %130 : vector<2x64xf32>
    %132 = arith.mulf %127, %131 : vector<2x64xf32>
    %133 = vector.extract_strided_slice %132 {offsets = [0, 0], sizes = [2, 32], strides = [1, 1]} : vector<2x64xf32> to vector<2x32xf32>
    %134 = vector.extract_strided_slice %132 {offsets = [0, 32], sizes = [2, 32], strides = [1, 1]} : vector<2x64xf32> to vector<2x32xf32>
    %c14 = arith.constant 14 : index
    %c0_30 = arith.constant 0 : index
    %135 = vector.load %arg10[%c14, %c0_30] : memref<16x256xf32, #tpu.memory_space<vmem>>, vector<2x256xf32>
    %cst_31 = arith.constant dense<0.000000e+00> : vector<2x256xf32>
    %136 = tpu.matmul %132, %7, %cst_31 {dimension_numbers = #tpu.dot_dimension_numbers<[1], [0], [0], [1], [0, 0, 1, 1], [], []>} : vector<2x64xf32>, vector<64x256xf32>, vector<2x256xf32> -> vector<2x256xf32>
    %137 = arith.addf %135, %136 : vector<2x256xf32>
    %138 = math.tanh %137 : vector<2x256xf32>
    %139 = arith.mulf %138, %10 : vector<2x256xf32>
    %140 = arith.addf %139, %13 : vector<2x256xf32>
    %141 = vector.extract_strided_slice %140 {offsets = [0, 0], sizes = [2, 64], strides = [1, 1]} : vector<2x256xf32> to vector<2x64xf32>
    %142 = vector.extract_strided_slice %140 {offsets = [0, 64], sizes = [2, 64], strides = [1, 1]} : vector<2x256xf32> to vector<2x64xf32>
    %143 = vector.extract_strided_slice %140 {offsets = [0, 128], sizes = [2, 64], strides = [1, 1]} : vector<2x256xf32> to vector<2x64xf32>
    %144 = vector.extract_strided_slice %140 {offsets = [0, 192], sizes = [2, 64], strides = [1, 1]} : vector<2x256xf32> to vector<2x64xf32>
    %145 = arith.mulf %142, %130 : vector<2x64xf32>
    %146 = arith.mulf %141, %143 : vector<2x64xf32>
    %147 = arith.addf %145, %146 : vector<2x64xf32>
    %148 = math.tanh %147 : vector<2x64xf32>
    %149 = arith.mulf %144, %148 : vector<2x64xf32>
    %150 = vector.extract_strided_slice %149 {offsets = [0, 0], sizes = [2, 32], strides = [1, 1]} : vector<2x64xf32> to vector<2x32xf32>
    %151 = vector.extract_strided_slice %149 {offsets = [0, 32], sizes = [2, 32], strides = [1, 1]} : vector<2x64xf32> to vector<2x32xf32>
    %152 = tpu.concatenate %31, %151 in 1 : vector<2x32xf32>, vector<2x32xf32> -> vector<2x64xf32>
    %153 = vector.shape_cast %152 : vector<2x64xf32> to vector<2x1x64xf32>
    %c0_32 = arith.constant 0 : index
    %c0_33 = arith.constant 0 : index
    %c0_34 = arith.constant 0 : index
    %154 = vector.load %arg8[%c0_32, %c0_33, %c0_34] : memref<2x8x64xf32, #tpu.memory_space<vmem>>, vector<2x1x64xf32>
    tpu.vector_store %arg8[%c0_32, %c0_33, %c0_34], %153 {strides = array<i32>} : memref<2x8x64xf32, #tpu.memory_space<vmem>>, vector<2x1x64xf32>,
    %155 = tpu.concatenate %48, %134 in 1 : vector<2x32xf32>, vector<2x32xf32> -> vector<2x64xf32>
    %156 = vector.shape_cast %155 : vector<2x64xf32> to vector<2x1x64xf32>
    %c0_35 = arith.constant 0 : index
    %c1 = arith.constant 1 : index
    %c0_36 = arith.constant 0 : index
    %157 = vector.load %arg8[%c0_35, %c1, %c0_36] : memref<2x8x64xf32, #tpu.memory_space<vmem>>, vector<2x1x64xf32>
    tpu.vector_store %arg8[%c0_35, %c1, %c0_36], %156 {strides = array<i32>} : memref<2x8x64xf32, #tpu.memory_space<vmem>>, vector<2x1x64xf32>,
    %158 = tpu.concatenate %65, %117 in 1 : vector<2x32xf32>, vector<2x32xf32> -> vector<2x64xf32>
    %159 = vector.shape_cast %158 : vector<2x64xf32> to vector<2x1x64xf32>
    %c0_37 = arith.constant 0 : index
    %c2_38 = arith.constant 2 : index
    %c0_39 = arith.constant 0 : index
    %160 = vector.load %arg8[%c0_37, %c2_38, %c0_39] : memref<2x8x64xf32, #tpu.memory_space<vmem>>, vector<2x1x64xf32>
    tpu.vector_store %arg8[%c0_37, %c2_38, %c0_39], %159 {strides = array<i32>} : memref<2x8x64xf32, #tpu.memory_space<vmem>>, vector<2x1x64xf32>,
    %161 = tpu.concatenate %82, %100 in 1 : vector<2x32xf32>, vector<2x32xf32> -> vector<2x64xf32>
    %162 = vector.shape_cast %161 : vector<2x64xf32> to vector<2x1x64xf32>
    %c0_40 = arith.constant 0 : index
    %c3 = arith.constant 3 : index
    %c0_41 = arith.constant 0 : index
    %163 = vector.load %arg8[%c0_40, %c3, %c0_41] : memref<2x8x64xf32, #tpu.memory_space<vmem>>, vector<2x1x64xf32>
    tpu.vector_store %arg8[%c0_40, %c3, %c0_41], %162 {strides = array<i32>} : memref<2x8x64xf32, #tpu.memory_space<vmem>>, vector<2x1x64xf32>,
    %164 = tpu.concatenate %99, %83 in 1 : vector<2x32xf32>, vector<2x32xf32> -> vector<2x64xf32>
    %165 = vector.shape_cast %164 : vector<2x64xf32> to vector<2x1x64xf32>
    %c0_42 = arith.constant 0 : index
    %c4_43 = arith.constant 4 : index
    %c0_44 = arith.constant 0 : index
    %166 = vector.load %arg8[%c0_42, %c4_43, %c0_44] : memref<2x8x64xf32, #tpu.memory_space<vmem>>, vector<2x1x64xf32>
    tpu.vector_store %arg8[%c0_42, %c4_43, %c0_44], %165 {strides = array<i32>} : memref<2x8x64xf32, #tpu.memory_space<vmem>>, vector<2x1x64xf32>,
    %167 = tpu.concatenate %116, %66 in 1 : vector<2x32xf32>, vector<2x32xf32> -> vector<2x64xf32>
    %168 = vector.shape_cast %167 : vector<2x64xf32> to vector<2x1x64xf32>
    %c0_45 = arith.constant 0 : index
    %c5 = arith.constant 5 : index
    %c0_46 = arith.constant 0 : index
    %169 = vector.load %arg8[%c0_45, %c5, %c0_46] : memref<2x8x64xf32, #tpu.memory_space<vmem>>, vector<2x1x64xf32>
    tpu.vector_store %arg8[%c0_45, %c5, %c0_46], %168 {strides = array<i32>} : memref<2x8x64xf32, #tpu.memory_space<vmem>>, vector<2x1x64xf32>,
    %170 = tpu.concatenate %133, %49 in 1 : vector<2x32xf32>, vector<2x32xf32> -> vector<2x64xf32>
    %171 = vector.shape_cast %170 : vector<2x64xf32> to vector<2x1x64xf32>
    %c0_47 = arith.constant 0 : index
    %c6_48 = arith.constant 6 : index
    %c0_49 = arith.constant 0 : index
    %172 = vector.load %arg8[%c0_47, %c6_48, %c0_49] : memref<2x8x64xf32, #tpu.memory_space<vmem>>, vector<2x1x64xf32>
    tpu.vector_store %arg8[%c0_47, %c6_48, %c0_49], %171 {strides = array<i32>} : memref<2x8x64xf32, #tpu.memory_space<vmem>>, vector<2x1x64xf32>,
    %173 = tpu.concatenate %150, %32 in 1 : vector<2x32xf32>, vector<2x32xf32> -> vector<2x64xf32>
    %174 = vector.shape_cast %173 : vector<2x64xf32> to vector<2x1x64xf32>
    %c0_50 = arith.constant 0 : index
    %c7 = arith.constant 7 : index
    %c0_51 = arith.constant 0 : index
    %175 = vector.load %arg8[%c0_50, %c7, %c0_51] : memref<2x8x64xf32, #tpu.memory_space<vmem>>, vector<2x1x64xf32>
    tpu.vector_store %arg8[%c0_50, %c7, %c0_51], %174 {strides = array<i32>} : memref<2x8x64xf32, #tpu.memory_space<vmem>>, vector<2x1x64xf32>,
    %176 = tpu.concatenate %150, %32 in 1 : vector<2x32xf32>, vector<2x32xf32> -> vector<2x64xf32>
    %c0_52 = arith.constant 0 : index
    %c0_53 = arith.constant 0 : index
    %177 = vector.load %arg6[%c0_52, %c0_53] : memref<64x1xf32, #tpu.memory_space<vmem>>, vector<64x1xf32>
    %cst_54 = arith.constant dense<0.000000e+00> : vector<2x1xf32>
    %178 = tpu.matmul %176, %177, %cst_54 {dimension_numbers = #tpu.dot_dimension_numbers<[1], [0], [0], [1], [0, 0, 1, 1], [], []>} : vector<2x64xf32>, vector<64x1xf32>, vector<2x1xf32> -> vector<2x1xf32>
    %c0_55 = arith.constant 0 : index
    %c0_56 = arith.constant 0 : index
    %179 = vector.load %arg7[%c0_55, %c0_56] : memref<1x1xf32, #tpu.memory_space<vmem>>, vector<1x1xf32>
    %180 = vector.broadcast %179 : vector<1x1xf32> to vector<2x1xf32>
    %181 = arith.addf %178, %180 : vector<2x1xf32>
    %cst_57 = arith.constant 5.000000e-01 : f32
    %182 = vector.broadcast %cst_57 : f32 to vector<2x1xf32>
    %183 = arith.mulf %182, %181 : vector<2x1xf32>
    %184 = math.tanh %183 : vector<2x1xf32>
    %cst_58 = arith.constant 5.000000e-01 : f32
    %185 = vector.broadcast %cst_58 : f32 to vector<2x1xf32>
    %186 = arith.mulf %185, %184 : vector<2x1xf32>
    %cst_59 = arith.constant 5.000000e-01 : f32
    %187 = vector.broadcast %cst_59 : f32 to vector<2x1xf32>
    %188 = arith.addf %186, %187 : vector<2x1xf32>
    %c0_60 = arith.constant 0 : index
    %c0_61 = arith.constant 0 : index
    %189 = vector.load %arg9[%c0_60, %c0_61] : memref<2x1xf32, #tpu.memory_space<vmem>>, vector<2x1xf32>
    tpu.vector_store %arg9[%c0_60, %c0_61], %188 {strides = array<i32>} : memref<2x1xf32, #tpu.memory_space<vmem>>, vector<2x1xf32>,
    return
  }
}

</mosaic_0001>

<llo_original>
// kernel: mul.31
$region0: #{mul.31}
  %s0 = inlined_call_operand.vmem [shape: f32[4,32], index: 0, kind: input, shape index: {}]
  %s1 = inlined_call_operand.vmem [shape: f32[128], index: 1, kind: output, shape index: {}]
  $region1: #{mul.31} parent=0
    #allocation0 [shape = 'u8[4096]{0}', space=vmem, size = 0x1000, scoped, tag = 'scoped mem for output reshape']
    #allocation1 [shape = 'u8[4096]{0}', space=vmem, size = 0x1000, scoped, tag = 'scoped mem for input reshape']
    %s3 = sshllo.u32 0, 4
    %v4 = vld [vmem:[%s0] sm:%s3]
    %5 = vst [vmem:[#allocation1] sm:%s3] %v4
    %v6 = vld [vmem:[#allocation1] sm:$0x1]
    %vm7 = vcmask 261120
    %8 = vst.msk [vmem:[#allocation0] sm:$0x1] %vm7, %v6
    %s9 = scalar_lea.vmem [#allocation1], 3
    %v10 = vld [vmem:[%s9] sm:$0x1]
    %11 = vrot.lane.b32.xlu0 %v10, 96
    %v12 = vpop.permute.xlu0 %11
    %vm13 = vcmask 1048320
    %14 = vst.msk [vmem:[#allocation0] sm:$0x1] %vm13, %v12
    %s15 = scalar_lea.vmem [#allocation1], 2
    %v16 = vld [vmem:[%s15] sm:$0x1]
    %17 = vrot.lane.b32.xlu0 %v16, 64
    %v18 = vpop.permute.xlu0 %17
    %vm19 = vcmask 785920
    %20 = vst.msk [vmem:[#allocation0] sm:$0x1] %vm19, %v18
    %s21 = scalar_lea.vmem [#allocation1], 1
    %v22 = vld [vmem:[%s21] sm:$0x1]
    %23 = vrot.lane.b32.xlu0 %v22, 32
    %v24 = vpop.permute.xlu0 %23
    %vm25 = vcmask 523520
    %26 = vst.msk [vmem:[#allocation0] sm:$0x1] %vm25, %v24
    %s28 = sshllo.u32 0, 1
    %v30 = vld [vmem:[#allocation0] sm:%s28]
    %s31 = sshllo.u32 0, 1
    %32 = vst [vmem:[%s1] sm:%s31] %v30

// kernel: bilstm_forward.1
$region0: #{bilstm_forward.1}
  #allocation0 [shape = 'u32[]', space=smem, size = 0x4, offset = 0x4, fixed_abs, tag = 'smem constant byte address 0x4 - core index']
  #allocation1 [shape = 'u32[144,128]{1,0:T(1,128)}', space=vmem, size = 0x12000, scoped, tag = 'internal scratch']
  #allocation2 [shape = 'f32[16,256]{1,0:T(8,128)}', space=vmem, size = 0x4000, scoped, tag = 'scratch operand']
  #allocation3 [shape = 'f32[1,1]{1,0:T(1,128)S(1)}', space=vmem, size = 0x200, scoped, tag = 'scoped memory for bilstm_forward.1']
  %s0 = inlined_call_operand.vmem [shape: f32[16,32], index: 0, kind: input, shape index: {}]
  %s1 = inlined_call_operand.vmem [shape: f32[32,256], index: 1, kind: input, shape index: {}]
  %s2 = inlined_call_operand.vmem [shape: f32[1,256], index: 2, kind: input, shape index: {}]
  %s3 = inlined_call_operand.vmem [shape: f32[64,256], index: 3, kind: input, shape index: {}]
  %s4 = inlined_call_operand.vmem [shape: f32[1,256], index: 4, kind: input, shape index: {}]
  %s5 = inlined_call_operand.vmem [shape: f32[1,256], index: 5, kind: input, shape index: {}]
  %s6 = inlined_call_operand.vmem [shape: f32[64,1], index: 6, kind: input, shape index: {}]
  %s7 = inlined_call_operand.<no memory space> [shape: f32[1,1], index: 7, kind: input, shape index: {}]
  %s8 = inlined_call_operand.hbm [shape: f32[2,8,64], index: 8, kind: output, shape index: {0}]
  %s9 = inlined_call_operand.vmem [shape: f32[2,1], index: 9, kind: output, shape index: {1}]
  %10 = xla_tuple %s8, %s9
  %s11 = sld [smem:[#allocation0]]
  $region50: #{bilstm_forward.1} parent=0
    _
  %s13 = ssub.s32 1, %s11
  %s14 = scalar_select 0, %s13, %s11
  %v15 = vstv %s7
  %16 = vst [vmem:[#allocation3] sm:$0x1] %v15
  $region1: #{bilstm_forward.1} parent=0
    #allocation4 [shape = 'u8[8192]{0}', space=vmem, size = 0x2000, scoped, tag = 'output window, operand 0, single buffered']
    #allocation5 [shape = 's32[1]{0}', space=sflag, size = 0x4, scoped, tag = 'scoped memory for bilstm_forward.1']
    %17 = vsyncpa [#allocation5], 0
    // Predicated region
    $region2: #{bilstm_forward.1} parent=1 // pred_check
      _
    $region3: #{bilstm_forward.1} parent=1 // pred_check_branch
      %19 = sbr.rel (0) target = $region5
    $region4: #{bilstm_forward.1} parent=1 // pred_region
      _
    $region5: #{bilstm_forward.1} parent=1 // pred_fallthru
      _
    // Predicated region
    $region6: #{bilstm_forward.1} parent=1 // pred_check
      _
    $region7: #{bilstm_forward.1} parent=1 // pred_check_branch
      %21 = sbr.rel (0) target = $region9
    $region8: #{bilstm_forward.1} parent=1 // pred_region
      _
    $region9: #{bilstm_forward.1} parent=1 // pred_fallthru
      _
    // Predicated region
    $region10: #{bilstm_forward.1} parent=1 // pred_check
      _
    $region11: #{bilstm_forward.1} parent=1 // pred_check_branch
      %23 = sbr.rel (0) target = $region13
    $region12: #{bilstm_forward.1} parent=1 // pred_region
      _
    $region13: #{bilstm_forward.1} parent=1 // pred_fallthru
      _
    // Predicated region
    $region14: #{bilstm_forward.1} parent=1 // pred_check
      _
    $region15: #{bilstm_forward.1} parent=1 // pred_check_branch
      %25 = sbr.rel (0) target = $region17
    $region16: #{bilstm_forward.1} parent=1 // pred_region
      _
    $region17: #{bilstm_forward.1} parent=1 // pred_fallthru
      _
    // Predicated region
    $region18: #{bilstm_forward.1} parent=1 // pred_check
      _
    $region19: #{bilstm_forward.1} parent=1 // pred_check_branch
      %27 = sbr.rel (0) target = $region21
    $region20: #{bilstm_forward.1} parent=1 // pred_region
      _
    $region21: #{bilstm_forward.1} parent=1 // pred_fallthru
      _
    // Predicated region
    $region22: #{bilstm_forward.1} parent=1 // pred_check
      _
    $region23: #{bilstm_forward.1} parent=1 // pred_check_branch
      %29 = sbr.rel (0) target = $region25
    $region24: #{bilstm_forward.1} parent=1 // pred_region
      _
    $region25: #{bilstm_forward.1} parent=1 // pred_fallthru
      _
    // Predicated region
    $region26: #{bilstm_forward.1} parent=1 // pred_check
      _
    $region27: #{bilstm_forward.1} parent=1 // pred_check_branch
      %31 = sbr.rel (0) target = $region29
    $region28: #{bilstm_forward.1} parent=1 // pred_region
      _
    $region29: #{bilstm_forward.1} parent=1 // pred_fallthru
      _
    // Predicated region
    $region30: #{bilstm_forward.1} parent=1 // pred_check
      _
    $region31: #{bilstm_forward.1} parent=1 // pred_check_branch
      %33 = sbr.rel (0) target = $region33
    $region32: #{bilstm_forward.1} parent=1 // pred_region
      _
    $region33: #{bilstm_forward.1} parent=1 // pred_fallthru
      _
    %v34 = vld [vmem:[%s0] sm:$0xff]
    %v35 = vld [vmem:[%s0 + $0x8] sm:$0xff]
    %v36 = vld [vmem:[%s1] sm:$0xff]
    %v37 = vld [vmem:[%s1 + $0x8] sm:$0xff]
    %v38 = vld [vmem:[%s1 + $0x10] sm:$0xff]
    %v39 = vld [vmem:[%s1 + $0x18] sm:$0xff]
    %v40 = vld [vmem:[%s1 + $0x20] sm:$0xff]
    %v41 = vld [vmem:[%s1 + $0x28] sm:$0xff]
    %v42 = vld [vmem:[%s1 + $0x30] sm:$0xff]
    %v43 = vld [vmem:[%s1 + $0x38] sm:$0xff]
    %v44 = vld [vmem:[%s2] sm:$0x3]
    %v46 = vlaneseq
    %v47 = vshrl.u32 %v46, 7
    %v48 = vsub.s32 0, %v47
    %v49 = vrot.slane %v44, %v48
    %v50 = vlaneseq
    %v51 = vshrl.u32 %v50, 7
    %v52 = vsub.s32 1, %v51
    %v53 = vrot.slane %v44, %v52
    %vm56 = vcmask 261120
    %v58 = vsel %vm56, %v34, 0
    %v61 = vsel %vm56, %v35, 0
    %63 = vmatprep.subr.mxu0 %v37
    %64 = vmatpush1.msra.mxu0 %v36
    %65 = vmatprep.subr.mxu0 %v39
    %66 = vmatpush1.msra.mxu0 %v38
    %67 = vmatprep.subr.mxu0 %v41
    %68 = vmatpush1.msra.mxu0 %v40
    %69 = vmatprep.subr.mxu0 %v43
    %70 = vmatpush1.msra.mxu0 %v42
    %71 = vmatprep.subr.mxu0 0.0
    %72 = vmatpush1.msra.mxu0 0.0
    %73 = vmatprep.subr.mxu0 0.0
    %74 = vmatpush1.msra.mxu0 0.0
    %75 = vmatprep.subr.mxu0 0.0
    %76 = vmatpush1.msra.mxu0 0.0
    %77 = vmatprep.subr.mxu0 0.0
    %78 = vmatpush1.msra.mxu0 0.0
    %79 = vmatprep.subr.mxu0 0.0
    %80 = vmatpush1.msra.mxu0 0.0
    %81 = vmatprep.subr.mxu0 0.0
    %82 = vmatpush1.msra.mxu0 0.0
    %83 = vmatprep.subr.mxu0 0.0
    %84 = vmatpush1.msra.mxu0 0.0
    %85 = vmatprep.subr.mxu0 0.0
    %86 = vmatpush1.msra.mxu0 0.0
    %87 = vmatprep.subr.mxu0 0.0
    %88 = vmatpush1.msra.mxu0 0.0
    %89 = vmatprep.subr.mxu0 0.0
    %90 = vmatpush1.msra.mxu0 0.0
    %91 = vmatprep.subr.mxu0 0.0
    %92 = vmatpush1.msra.mxu0 0.0
    %93 = vmatprep.subr.mxu0 0.0
    %94 = vmatpush1.msra.mxu0 0.0
    %95 = vmatprep.subr.mxu0 0.0
    %96 = vmatpush1.msra.mxu0 0.0
    %97 = vmatprep.subr.mxu0 0.0
    %98 = vmatpush1.msra.mxu0 0.0
    %99 = vmatprep.subr.mxu0 0.0
    %100 = vmatpush1.msra.mxu0 0.0
    %101 = vmatprep.subr.mxu0 0.0
    %102 = vmatpush1.msra.mxu0 0.0
    %103 = vmatprep.subr.mxu0 0.0
    %104 = vmatpush1.msra.mxu0 0.0
    %105 = vmatprep.subr.mxu0 0.0
    %106 = vmatpush1.msra.mxu0 0.0
    %107 = vmatprep.subr.mxu0 0.0
    %108 = vmatpush1.msra.mxu0 0.0
    %109 = vmatprep.subr.mxu0 0.0
    %110 = vmatpush1.msra.mxu0 0.0
    %111 = vmatprep.subr.mxu0 0.0
    %112 = vmatpush1.msra.mxu0 0.0
    %113 = vmatprep.subr.mxu0 0.0
    %114 = vmatpush1.msra.mxu0 0.0
    %115 = vmatprep.subr.mxu0 0.0
    %116 = vmatpush1.msra.mxu0 0.0
    %117 = vmatprep.subr.mxu0 0.0
    %118 = vmatpush1.msra.mxu0 0.0
    %119 = vmatprep.subr.mxu0 0.0
    %120 = vmatpush1.msra.mxu0 0.0
    %121 = vmatprep.subr.mxu0 0.0
    %122 = vmatpush1.msra.mxu0 0.0
    %123 = vmatprep.subr.mxu0 0.0
    %124 = vmatpush1.msra.mxu0 0.0
    %125 = vmatprep.subr.mxu0 0.0
    %126 = vmatpush1.msra.mxu0 0.0
    %127 = vmatprep.mubr.f32.mxu0 0.0
    %128 = vmatmul.mubr.f32.gmra.mrb[0].mxu0 %v58
    %v129 = vpop.f32.mrb[0].mxu0
    %v130 = vadd.f32 %v49, %v129
    %v131 = vpop.f32.mrb[0].mxu0
    %v132 = vadd.f32 %v53, %v131
    %133 = vmatprep.mubr.f32.mxu0 0.0
    %134 = vmatmul.mubr.f32.gmra.mrb[0].mxu0 %v61
    %v135 = vpop.f32.mrb[0].mxu0
    %v136 = vadd.f32 %v49, %v135
    %v137 = vpop.f32.mrb[0].mxu0
    %v138 = vadd.f32 %v53, %v137
    %139 = vdwg.mxu0
    %140 = vst [vmem:[#allocation2] sm:$0xff] %v130
    %141 = vst [vmem:[#allocation2 + $0x8] sm:$0xff] %v132
    %142 = vst [vmem:[#allocation2 + $0x10] sm:$0xff] %v136
    %143 = vst [vmem:[#allocation2 + $0x18] sm:$0xff] %v138
    %v144 = vld [vmem:[%s3] sm:$0xff]
    %v145 = vld [vmem:[%s3 + $0x8] sm:$0xff]
    %v146 = vld [vmem:[%s3 + $0x10] sm:$0xff]
    %v147 = vld [vmem:[%s3 + $0x18] sm:$0xff]
    %v148 = vld [vmem:[%s3 + $0x20] sm:$0xff]
    %v149 = vld [vmem:[%s3 + $0x28] sm:$0xff]
    %v150 = vld [vmem:[%s3 + $0x30] sm:$0xff]
    %v151 = vld [vmem:[%s3 + $0x38] sm:$0xff]
    %v152 = vld [vmem:[%s3 + $0x40] sm:$0xff]
    %v153 = vld [vmem:[%s3 + $0x48] sm:$0xff]
    %v154 = vld [vmem:[%s3 + $0x50] sm:$0xff]
    %v155 = vld [vmem:[%s3 + $0x58] sm:$0xff]
    %v156 = vld [vmem:[%s3 + $0x60] sm:$0xff]
    %v157 = vld [vmem:[%s3 + $0x68] sm:$0xff]
    %v158 = vld [vmem:[%s3 + $0x70] sm:$0xff]
    %v159 = vld [vmem:[%s3 + $0x78] sm:$0xff]
    %v160 = vld [vmem:[%s4] sm:$0x3]
    %v162 = vlaneseq
    %v163 = vshrl.u32 %v162, 7
    %v164 = vsub.s32 0, %v163
    %v165 = vrot.slane %v160, %v164
    %v166 = vlaneseq
    %v167 = vshrl.u32 %v166, 7
    %v168 = vsub.s32 1, %v167
    %v169 = vrot.slane %v160, %v168
    %v172 = vld [vmem:[%s5] sm:$0x3]
    %v174 = vlaneseq
    %v175 = vshrl.u32 %v174, 7
    %v176 = vsub.s32 0, %v175
    %v177 = vrot.slane %v172, %v176
    %v178 = vlaneseq
    %v179 = vshrl.u32 %v178, 7
    %v180 = vsub.s32 1, %v179
    %v181 = vrot.slane %v172, %v180
    %v184 = vld [vmem:[#allocation2] sm:$0x3]
    %v185 = vld [vmem:[#allocation2 + $0x8] sm:$0x3]
    %vm186 = vcmask 523264
    %v188 = vsel %vm186, 0.0, 0
    %190 = vmatprep.subr.mxu0 %v145
    %191 = vmatpush1.msra.mxu0 %v144
    %192 = vmatprep.subr.mxu0 %v147
    %193 = vmatpush1.msra.mxu0 %v146
    %194 = vmatprep.subr.mxu0 %v149
    %195 = vmatpush1.msra.mxu0 %v148
    %196 = vmatprep.subr.mxu0 %v151
    %197 = vmatpush1.msra.mxu0 %v150
    %198 = vmatprep.subr.mxu0 %v153
    %199 = vmatpush1.msra.mxu0 %v152
    %200 = vmatprep.subr.mxu0 %v155
    %201 = vmatpush1.msra.mxu0 %v154
    %202 = vmatprep.subr.mxu0 %v157
    %203 = vmatpush1.msra.mxu0 %v156
    %204 = vmatprep.subr.mxu0 %v159
    %205 = vmatpush1.msra.mxu0 %v158
    %206 = vmatprep.subr.mxu0 0.0
    %207 = vmatpush1.msra.mxu0 0.0
    %208 = vmatprep.subr.mxu0 0.0
    %209 = vmatpush1.msra.mxu0 0.0
    %210 = vmatprep.subr.mxu0 0.0
    %211 = vmatpush1.msra.mxu0 0.0
    %212 = vmatprep.subr.mxu0 0.0
    %213 = vmatpush1.msra.mxu0 0.0
    %214 = vmatprep.subr.mxu0 0.0
    %215 = vmatpush1.msra.mxu0 0.0
    %216 = vmatprep.subr.mxu0 0.0
    %217 = vmatpush1.msra.mxu0 0.0
    %218 = vmatprep.subr.mxu0 0.0
    %219 = vmatpush1.msra.mxu0 0.0
    %220 = vmatprep.subr.mxu0 0.0
    %221 = vmatpush1.msra.mxu0 0.0
    %222 = vmatprep.subr.mxu0 0.0
    %223 = vmatpush1.msra.mxu0 0.0
    %224 = vmatprep.subr.mxu0 0.0
    %225 = vmatpush1.msra.mxu0 0.0
    %226 = vmatprep.subr.mxu0 0.0
    %227 = vmatpush1.msra.mxu0 0.0
    %228 = vmatprep.subr.mxu0 0.0
    %229 = vmatpush1.msra.mxu0 0.0
    %230 = vmatprep.subr.mxu0 0.0
    %231 = vmatpush1.msra.mxu0 0.0
    %232 = vmatprep.subr.mxu0 0.0
    %233 = vmatpush1.msra.mxu0 0.0
    %234 = vmatprep.subr.mxu0 0.0
    %235 = vmatpush1.msra.mxu0 0.0
    %236 = vmatprep.subr.mxu0 0.0
    %237 = vmatpush1.msra.mxu0 0.0
    %238 = vmatprep.subr.mxu0 0.0
    %239 = vmatpush1.msra.mxu0 0.0
    %240 = vmatprep.subr.mxu0 0.0
    %241 = vmatpush1.msra.mxu0 0.0
    %242 = vmatprep.subr.mxu0 0.0
    %243 = vmatpush1.msra.mxu0 0.0
    %244 = vmatprep.subr.mxu0 0.0
    %245 = vmatpush1.msra.mxu0 0.0
    %246 = vmatprep.subr.mxu0 0.0
    %247 = vmatpush1.msra.mxu0 0.0
    %248 = vmatprep.subr.mxu0 0.0
    %249 = vmatpush1.msra.mxu0 0.0
    %250 = vmatprep.subr.mxu0 0.0
    %251 = vmatpush1.msra.mxu0 0.0
    %252 = vmatprep.subr.mxu0 0.0
    %253 = vmatpush1.msra.mxu0 0.0
    %254 = vmatprep.mubr.f32.mxu0 0.0
    %255 = vmatmul.mubr.f32.gmra.mrb[0].mxu0 %v188
    %v256 = vpop.f32.mrb[0].mxu0
    %v257 = vadd.f32 0.0, %v256
    %v258 = vpop.f32.mrb[0].mxu0
    %v259 = vadd.f32 0.0, %v258
    %260 = vdwg.mxu0
    %v261 = vadd.f32 %v184, %v257
    %v262 = vadd.f32 %v185, %v259
    %v263 = vtanh.pop %v261
    %v264 = vtanh.pop %v262
    %v265 = vmul.f32 %v263, %v165
    %v266 = vmul.f32 %v264, %v169
    %v267 = vadd.f32 %v265, %v177
    %v268 = vadd.f32 %v266, %v181
    %v269 = vmul.f32 %v267, 0.0
    %v270 = vmul.f32 %v267, %v268
    %272 = vrot.lane.b32.xlu0 %v270, 64
    %v273 = vpop.permute.xlu0 %272
    %v275 = vadd.f32 %v269, %v273
    %v276 = vtanh.pop %v275
    %v277 = vmul.f32 %v268, %v276
    %v278 = vld [vmem:[#allocation2] sm:$0xc]
    %v279 = vld [vmem:[#allocation2 + $0x8] sm:$0xc]
    %281 = vrot.lane.b32.xlu0 %v277, 64
    %v282 = vpop.permute.xlu0 %281
    %v283 = vsel %vm186, %v282, 0
    %285 = vmatprep.subr.mxu0 %v145
    %286 = vmatpush1.msra.mxu0 %v144
    %287 = vmatprep.subr.mxu0 %v147
    %288 = vmatpush1.msra.mxu0 %v146
    %289 = vmatprep.subr.mxu0 %v149
    %290 = vmatpush1.msra.mxu0 %v148
    %291 = vmatprep.subr.mxu0 %v151
    %292 = vmatpush1.msra.mxu0 %v150
    %293 = vmatprep.subr.mxu0 %v153
    %294 = vmatpush1.msra.mxu0 %v152
    %295 = vmatprep.subr.mxu0 %v155
    %296 = vmatpush1.msra.mxu0 %v154
    %297 = vmatprep.subr.mxu0 %v157
    %298 = vmatpush1.msra.mxu0 %v156
    %299 = vmatprep.subr.mxu0 %v159
    %300 = vmatpush1.msra.mxu0 %v158
    %301 = vmatprep.subr.mxu0 0.0
    %302 = vmatpush1.msra.mxu0 0.0
    %303 = vmatprep.subr.mxu0 0.0
    %304 = vmatpush1.msra.mxu0 0.0
    %305 = vmatprep.subr.mxu0 0.0
    %306 = vmatpush1.msra.mxu0 0.0
    %307 = vmatprep.subr.mxu0 0.0
    %308 = vmatpush1.msra.mxu0 0.0
    %309 = vmatprep.subr.mxu0 0.0
    %310 = vmatpush1.msra.mxu0 0.0
    %311 = vmatprep.subr.mxu0 0.0
    %312 = vmatpush1.msra.mxu0 0.0
    %313 = vmatprep.subr.mxu0 0.0
    %314 = vmatpush1.msra.mxu0 0.0
    %315 = vmatprep.subr.mxu0 0.0
    %316 = vmatpush1.msra.mxu0 0.0
    %317 = vmatprep.subr.mxu0 0.0
    %318 = vmatpush1.msra.mxu0 0.0
    %319 = vmatprep.subr.mxu0 0.0
    %320 = vmatpush1.msra.mxu0 0.0
    %321 = vmatprep.subr.mxu0 0.0
    %322 = vmatpush1.msra.mxu0 0.0
    %323 = vmatprep.subr.mxu0 0.0
    %324 = vmatpush1.msra.mxu0 0.0
    %325 = vmatprep.subr.mxu0 0.0
    %326 = vmatpush1.msra.mxu0 0.0
    %327 = vmatprep.subr.mxu0 0.0
    %328 = vmatpush1.msra.mxu0 0.0
    %329 = vmatprep.subr.mxu0 0.0
    %330 = vmatpush1.msra.mxu0 0.0
    %331 = vmatprep.subr.mxu0 0.0
    %332 = vmatpush1.msra.mxu0 0.0
    %333 = vmatprep.subr.mxu0 0.0
    %334 = vmatpush1.msra.mxu0 0.0
    %335 = vmatprep.subr.mxu0 0.0
    %336 = vmatpush1.msra.mxu0 0.0
    %337 = vmatprep.subr.mxu0 0.0
    %338 = vmatpush1.msra.mxu0 0.0
    %339 = vmatprep.subr.mxu0 0.0
    %340 = vmatpush1.msra.mxu0 0.0
    %341 = vmatprep.subr.mxu0 0.0
    %342 = vmatpush1.msra.mxu0 0.0
    %343 = vmatprep.subr.mxu0 0.0
    %344 = vmatpush1.msra.mxu0 0.0
    %345 = vmatprep.subr.mxu0 0.0
    %346 = vmatpush1.msra.mxu0 0.0
    %347 = vmatprep.subr.mxu0 0.0
    %348 = vmatpush1.msra.mxu0 0.0
    %349 = vmatprep.mubr.f32.mxu0 0.0
    %350 = vmatmul.mubr.f32.gmra.mrb[0].mxu0 %v283
    %v351 = vpop.f32.mrb[0].mxu0
    %v352 = vadd.f32 0.0, %v351
    %v353 = vpop.f32.mrb[0].mxu0
    %v354 = vadd.f32 0.0, %v353
    %355 = vdwg.mxu0
    %v358 = vrot.slane %v352, 6
    %v359 = vrot.slane %v354, 6
    %v362 = vadd.f32 %v278, %v358
    %v363 = vadd.f32 %v279, %v359
    %v364 = vtanh.pop %v362
    %v365 = vtanh.pop %v363
    %v366 = vmul.f32 %v364, %v165
    %v367 = vmul.f32 %v365, %v169
    %v368 = vadd.f32 %v366, %v177
    %v369 = vadd.f32 %v367, %v181
    %v371 = vrot.slane %v275, 6
    %v373 = vmul.f32 %v368, %v371
    %v374 = vmul.f32 %v368, %v369
    %376 = vrot.lane.b32.xlu0 %v374, 64
    %v377 = vpop.permute.xlu0 %376
    %v379 = vadd.f32 %v373, %v377
    %v380 = vtanh.pop %v379
    %v381 = vmul.f32 %v369, %v380
    %v382 = vld [vmem:[#allocation2] sm:$0x30]
    %v383 = vld [vmem:[#allocation2 + $0x8] sm:$0x30]
    %v385 = vrot.slane %v381, 2
    %386 = vrot.lane.b32.xlu0 %v385, 64
    %v387 = vpop.permute.xlu0 %386
    %v388 = vsel %vm186, %v387, 0
    %390 = vmatprep.subr.mxu0 %v145
    %391 = vmatpush1.msra.mxu0 %v144
    %392 = vmatprep.subr.mxu0 %v147
    %393 = vmatpush1.msra.mxu0 %v146
    %394 = vmatprep.subr.mxu0 %v149
    %395 = vmatpush1.msra.mxu0 %v148
    %396 = vmatprep.subr.mxu0 %v151
    %397 = vmatpush1.msra.mxu0 %v150
    %398 = vmatprep.subr.mxu0 %v153
    %399 = vmatpush1.msra.mxu0 %v152
    %400 = vmatprep.subr.mxu0 %v155
    %401 = vmatpush1.msra.mxu0 %v154
    %402 = vmatprep.subr.mxu0 %v157
    %403 = vmatpush1.msra.mxu0 %v156
    %404 = vmatprep.subr.mxu0 %v159
    %405 = vmatpush1.msra.mxu0 %v158
    %406 = vmatprep.subr.mxu0 0.0
    %407 = vmatpush1.msra.mxu0 0.0
    %408 = vmatprep.subr.mxu0 0.0
    %409 = vmatpush1.msra.mxu0 0.0
    %410 = vmatprep.subr.mxu0 0.0
    %411 = vmatpush1.msra.mxu0 0.0
    %412 = vmatprep.subr.mxu0 0.0
    %413 = vmatpush1.msra.mxu0 0.0
    %414 = vmatprep.subr.mxu0 0.0
    %415 = vmatpush1.msra.mxu0 0.0
    %416 = vmatprep.subr.mxu0 0.0
    %417 = vmatpush1.msra.mxu0 0.0
    %418 = vmatprep.subr.mxu0 0.0
    %419 = vmatpush1.msra.mxu0 0.0
    %420 = vmatprep.subr.mxu0 0.0
    %421 = vmatpush1.msra.mxu0 0.0
    %422 = vmatprep.subr.mxu0 0.0
    %423 = vmatpush1.msra.mxu0 0.0
    %424 = vmatprep.subr.mxu0 0.0
    %425 = vmatpush1.msra.mxu0 0.0
    %426 = vmatprep.subr.mxu0 0.0
    %427 = vmatpush1.msra.mxu0 0.0
    %428 = vmatprep.subr.mxu0 0.0
    %429 = vmatpush1.msra.mxu0 0.0
    %430 = vmatprep.subr.mxu0 0.0
    %431 = vmatpush1.msra.mxu0 0.0
    %432 = vmatprep.subr.mxu0 0.0
    %433 = vmatpush1.msra.mxu0 0.0
    %434 = vmatprep.subr.mxu0 0.0
    %435 = vmatpush1.msra.mxu0 0.0
    %436 = vmatprep.subr.mxu0 0.0
    %437 = vmatpush1.msra.mxu0 0.0
    %438 = vmatprep.subr.mxu0 0.0
    %439 = vmatpush1.msra.mxu0 0.0
    %440 = vmatprep.subr.mxu0 0.0
    %441 = vmatpush1.msra.mxu0 0.0
    %442 = vmatprep.subr.mxu0 0.0
    %443 = vmatpush1.msra.mxu0 0.0
    %444 = vmatprep.subr.mxu0 0.0
    %445 = vmatpush1.msra.mxu0 0.0
    %446 = vmatprep.subr.mxu0 0.0
    %447 = vmatpush1.msra.mxu0 0.0
    %448 = vmatprep.subr.mxu0 0.0
    %449 = vmatpush1.msra.mxu0 0.0
    %450 = vmatprep.subr.mxu0 0.0
    %451 = vmatpush1.msra.mxu0 0.0
    %452 = vmatprep.subr.mxu0 0.0
    %453 = vmatpush1.msra.mxu0 0.0
    %454 = vmatprep.mubr.f32.mxu0 0.0
    %455 = vmatmul.mubr.f32.gmra.mrb[0].mxu0 %v388
    %v456 = vpop.f32.mrb[0].mxu0
    %v457 = vadd.f32 0.0, %v456
    %v458 = vpop.f32.mrb[0].mxu0
    %v459 = vadd.f32 0.0, %v458
    %460 = vdwg.mxu0
    %v463 = vrot.slane %v457, 4
    %v464 = vrot.slane %v459, 4
    %v467 = vadd.f32 %v382, %v463
    %v468 = vadd.f32 %v383, %v464
    %v469 = vtanh.pop %v467
    %v470 = vtanh.pop %v468
    %v471 = vmul.f32 %v469, %v165
    %v472 = vmul.f32 %v470, %v169
    %v473 = vadd.f32 %v471, %v177
    %v474 = vadd.f32 %v472, %v181
    %v476 = vrot.slane %v379, 6
    %v478 = vmul.f32 %v473, %v476
    %v479 = vmul.f32 %v473, %v474
    %481 = vrot.lane.b32.xlu0 %v479, 64
    %v482 = vpop.permute.xlu0 %481
    %v484 = vadd.f32 %v478, %v482
    %v485 = vtanh.pop %v484
    %v486 = vmul.f32 %v474, %v485
    %v487 = vld [vmem:[#allocation2] sm:$0xc0]
    %v488 = vld [vmem:[#allocation2 + $0x8] sm:$0xc0]
    %v490 = vrot.slane %v486, 4
    %491 = vrot.lane.b32.xlu0 %v490, 64
    %v492 = vpop.permute.xlu0 %491
    %v493 = vsel %vm186, %v492, 0
    %495 = vmatprep.subr.mxu0 %v145
    %496 = vmatpush1.msra.mxu0 %v144
    %497 = vmatprep.subr.mxu0 %v147
    %498 = vmatpush1.msra.mxu0 %v146
    %499 = vmatprep.subr.mxu0 %v149
    %500 = vmatpush1.msra.mxu0 %v148
    %501 = vmatprep.subr.mxu0 %v151
    %502 = vmatpush1.msra.mxu0 %v150
    %503 = vmatprep.subr.mxu0 %v153
    %504 = vmatpush1.msra.mxu0 %v152
    %505 = vmatprep.subr.mxu0 %v155
    %506 = vmatpush1.msra.mxu0 %v154
    %507 = vmatprep.subr.mxu0 %v157
    %508 = vmatpush1.msra.mxu0 %v156
    %509 = vmatprep.subr.mxu0 %v159
    %510 = vmatpush1.msra.mxu0 %v158
    %511 = vmatprep.subr.mxu0 0.0
    %512 = vmatpush1.msra.mxu0 0.0
    %513 = vmatprep.subr.mxu0 0.0
    %514 = vmatpush1.msra.mxu0 0.0
    %515 = vmatprep.subr.mxu0 0.0
    %516 = vmatpush1.msra.mxu0 0.0
    %517 = vmatprep.subr.mxu0 0.0
    %518 = vmatpush1.msra.mxu0 0.0
    %519 = vmatprep.subr.mxu0 0.0
    %520 = vmatpush1.msra.mxu0 0.0
    %521 = vmatprep.subr.mxu0 0.0
    %522 = vmatpush1.msra.mxu0 0.0
    %523 = vmatprep.subr.mxu0 0.0
    %524 = vmatpush1.msra.mxu0 0.0
    %525 = vmatprep.subr.mxu0 0.0
    %526 = vmatpush1.msra.mxu0 0.0
    %527 = vmatprep.subr.mxu0 0.0
    %528 = vmatpush1.msra.mxu0 0.0
    %529 = vmatprep.subr.mxu0 0.0
    %530 = vmatpush1.msra.mxu0 0.0
    %531 = vmatprep.subr.mxu0 0.0
    %532 = vmatpush1.msra.mxu0 0.0
    %533 = vmatprep.subr.mxu0 0.0
    %534 = vmatpush1.msra.mxu0 0.0
    %535 = vmatprep.subr.mxu0 0.0
    %536 = vmatpush1.msra.mxu0 0.0
    %537 = vmatprep.subr.mxu0 0.0
    %538 = vmatpush1.msra.mxu0 0.0
    %539 = vmatprep.subr.mxu0 0.0
    %540 = vmatpush1.msra.mxu0 0.0
    %541 = vmatprep.subr.mxu0 0.0
    %542 = vmatpush1.msra.mxu0 0.0
    %543 = vmatprep.subr.mxu0 0.0
    %544 = vmatpush1.msra.mxu0 0.0
    %545 = vmatprep.subr.mxu0 0.0
    %546 = vmatpush1.msra.mxu0 0.0
    %547 = vmatprep.subr.mxu0 0.0
    %548 = vmatpush1.msra.mxu0 0.0
    %549 = vmatprep.subr.mxu0 0.0
    %550 = vmatpush1.msra.mxu0 0.0
    %551 = vmatprep.subr.mxu0 0.0
    %552 = vmatpush1.msra.mxu0 0.0
    %553 = vmatprep.subr.mxu0 0.0
    %554 = vmatpush1.msra.mxu0 0.0
    %555 = vmatprep.subr.mxu0 0.0
    %556 = vmatpush1.msra.mxu0 0.0
    %557 = vmatprep.subr.mxu0 0.0
    %558 = vmatpush1.msra.mxu0 0.0
    %559 = vmatprep.mubr.f32.mxu0 0.0
    %560 = vmatmul.mubr.f32.gmra.mrb[0].mxu0 %v493
    %v561 = vpop.f32.mrb[0].mxu0
    %v562 = vadd.f32 0.0, %v561
    %v563 = vpop.f32.mrb[0].mxu0
    %v564 = vadd.f32 0.0, %v563
    %565 = vdwg.mxu0
    %v568 = vrot.slane %v562, 2
    %v569 = vrot.slane %v564, 2
    %v572 = vadd.f32 %v487, %v568
    %v573 = vadd.f32 %v488, %v569
    %v574 = vtanh.pop %v572
    %v575 = vtanh.pop %v573
    %v576 = vmul.f32 %v574, %v165
    %v577 = vmul.f32 %v575, %v169
    %v578 = vadd.f32 %v576, %v177
    %v579 = vadd.f32 %v577, %v181
    %v581 = vrot.slane %v484, 6
    %v583 = vmul.f32 %v578, %v581
    %v584 = vmul.f32 %v578, %v579
    %586 = vrot.lane.b32.xlu0 %v584, 64
    %v587 = vpop.permute.xlu0 %586
    %v589 = vadd.f32 %v583, %v587
    %v590 = vtanh.pop %v589
    %v591 = vmul.f32 %v579, %v590
    %v592 = vld [vmem:[#allocation2 + $0x10] sm:$0x3]
    %v593 = vld [vmem:[#allocation2 + $0x18] sm:$0x3]
    %v595 = vrot.slane %v591, 6
    %596 = vrot.lane.b32.xlu0 %v595, 64
    %v597 = vpop.permute.xlu0 %596
    %v598 = vsel %vm186, %v597, 0
    %600 = vmatprep.subr.mxu0 %v145
    %601 = vmatpush1.msra.mxu0 %v144
    %602 = vmatprep.subr.mxu0 %v147
    %603 = vmatpush1.msra.mxu0 %v146
    %604 = vmatprep.subr.mxu0 %v149
    %605 = vmatpush1.msra.mxu0 %v148
    %606 = vmatprep.subr.mxu0 %v151
    %607 = vmatpush1.msra.mxu0 %v150
    %608 = vmatprep.subr.mxu0 %v153
    %609 = vmatpush1.msra.mxu0 %v152
    %610 = vmatprep.subr.mxu0 %v155
    %611 = vmatpush1.msra.mxu0 %v154
    %612 = vmatprep.subr.mxu0 %v157
    %613 = vmatpush1.msra.mxu0 %v156
    %614 = vmatprep.subr.mxu0 %v159
    %615 = vmatpush1.msra.mxu0 %v158
    %616 = vmatprep.subr.mxu0 0.0
    %617 = vmatpush1.msra.mxu0 0.0
    %618 = vmatprep.subr.mxu0 0.0
    %619 = vmatpush1.msra.mxu0 0.0
    %620 = vmatprep.subr.mxu0 0.0
    %621 = vmatpush1.msra.mxu0 0.0
    %622 = vmatprep.subr.mxu0 0.0
    %623 = vmatpush1.msra.mxu0 0.0
    %624 = vmatprep.subr.mxu0 0.0
    %625 = vmatpush1.msra.mxu0 0.0
    %626 = vmatprep.subr.mxu0 0.0
    %627 = vmatpush1.msra.mxu0 0.0
    %628 = vmatprep.subr.mxu0 0.0
    %629 = vmatpush1.msra.mxu0 0.0
    %630 = vmatprep.subr.mxu0 0.0
    %631 = vmatpush1.msra.mxu0 0.0
    %632 = vmatprep.subr.mxu0 0.0
    %633 = vmatpush1.msra.mxu0 0.0
    %634 = vmatprep.subr.mxu0 0.0
    %635 = vmatpush1.msra.mxu0 0.0
    %636 = vmatprep.subr.mxu0 0.0
    %637 = vmatpush1.msra.mxu0 0.0
    %638 = vmatprep.subr.mxu0 0.0
    %639 = vmatpush1.msra.mxu0 0.0
    %640 = vmatprep.subr.mxu0 0.0
    %641 = vmatpush1.msra.mxu0 0.0
    %642 = vmatprep.subr.mxu0 0.0
    %643 = vmatpush1.msra.mxu0 0.0
    %644 = vmatprep.subr.mxu0 0.0
    %645 = vmatpush1.msra.mxu0 0.0
    %646 = vmatprep.subr.mxu0 0.0
    %647 = vmatpush1.msra.mxu0 0.0
    %648 = vmatprep.subr.mxu0 0.0
    %649 = vmatpush1.msra.mxu0 0.0
    %650 = vmatprep.subr.mxu0 0.0
    %651 = vmatpush1.msra.mxu0 0.0
    %652 = vmatprep.subr.mxu0 0.0
    %653 = vmatpush1.msra.mxu0 0.0
    %654 = vmatprep.subr.mxu0 0.0
    %655 = vmatpush1.msra.mxu0 0.0
    %656 = vmatprep.subr.mxu0 0.0
    %657 = vmatpush1.msra.mxu0 0.0
    %658 = vmatprep.subr.mxu0 0.0
    %659 = vmatpush1.msra.mxu0 0.0
    %660 = vmatprep.subr.mxu0 0.0
    %661 = vmatpush1.msra.mxu0 0.0
    %662 = vmatprep.subr.mxu0 0.0
    %663 = vmatpush1.msra.mxu0 0.0
    %664 = vmatprep.mubr.f32.mxu0 0.0
    %665 = vmatmul.mubr.f32.gmra.mrb[0].mxu0 %v598
    %v666 = vpop.f32.mrb[0].mxu0
    %v667 = vadd.f32 0.0, %v666
    %v668 = vpop.f32.mrb[0].mxu0
    %v669 = vadd.f32 0.0, %v668
    %670 = vdwg.mxu0
    %v671 = vadd.f32 %v592, %v667
    %v672 = vadd.f32 %v593, %v669
    %v673 = vtanh.pop %v671
    %v674 = vtanh.pop %v672
    %v675 = vmul.f32 %v673, %v165
    %v676 = vmul.f32 %v674, %v169
    %v677 = vadd.f32 %v675, %v177
    %v678 = vadd.f32 %v676, %v181
    %v680 = vrot.slane %v589, 6
    %v682 = vmul.f32 %v677, %v680
    %v683 = vmul.f32 %v677, %v678
    %685 = vrot.lane.b32.xlu0 %v683, 64
    %v686 = vpop.permute.xlu0 %685
    %v688 = vadd.f32 %v682, %v686
    %v689 = vtanh.pop %v688
    %v690 = vmul.f32 %v678, %v689
    %v691 = vld [vmem:[#allocation2 + $0x10] sm:$0xc]
    %v692 = vld [vmem:[#allocation2 + $0x18] sm:$0xc]
    %694 = vrot.lane.b32.xlu0 %v690, 64
    %v695 = vpop.permute.xlu0 %694
    %v696 = vsel %vm186, %v695, 0
    %698 = vmatprep.subr.mxu0 %v145
    %699 = vmatpush1.msra.mxu0 %v144
    %700 = vmatprep.subr.mxu0 %v147
    %701 = vmatpush1.msra.mxu0 %v146
    %702 = vmatprep.subr.mxu0 %v149
    %703 = vmatpush1.msra.mxu0 %v148
    %704 = vmatprep.subr.mxu0 %v151
    %705 = vmatpush1.msra.mxu0 %v150
    %706 = vmatprep.subr.mxu0 %v153
    %707 = vmatpush1.msra.mxu0 %v152
    %708 = vmatprep.subr.mxu0 %v155
    %709 = vmatpush1.msra.mxu0 %v154
    %710 = vmatprep.subr.mxu0 %v157
    %711 = vmatpush1.msra.mxu0 %v156
    %712 = vmatprep.subr.mxu0 %v159
    %713 = vmatpush1.msra.mxu0 %v158
    %714 = vmatprep.subr.mxu0 0.0
    %715 = vmatpush1.msra.mxu0 0.0
    %716 = vmatprep.subr.mxu0 0.0
    %717 = vmatpush1.msra.mxu0 0.0
    %718 = vmatprep.subr.mxu0 0.0
    %719 = vmatpush1.msra.mxu0 0.0
    %720 = vmatprep.subr.mxu0 0.0
    %721 = vmatpush1.msra.mxu0 0.0
    %722 = vmatprep.subr.mxu0 0.0
    %723 = vmatpush1.msra.mxu0 0.0
    %724 = vmatprep.subr.mxu0 0.0
    %725 = vmatpush1.msra.mxu0 0.0
    %726 = vmatprep.subr.mxu0 0.0
    %727 = vmatpush1.msra.mxu0 0.0
    %728 = vmatprep.subr.mxu0 0.0
    %729 = vmatpush1.msra.mxu0 0.0
    %730 = vmatprep.subr.mxu0 0.0
    %731 = vmatpush1.msra.mxu0 0.0
    %732 = vmatprep.subr.mxu0 0.0
    %733 = vmatpush1.msra.mxu0 0.0
    %734 = vmatprep.subr.mxu0 0.0
    %735 = vmatpush1.msra.mxu0 0.0
    %736 = vmatprep.subr.mxu0 0.0
    %737 = vmatpush1.msra.mxu0 0.0
    %738 = vmatprep.subr.mxu0 0.0
    %739 = vmatpush1.msra.mxu0 0.0
    %740 = vmatprep.subr.mxu0 0.0
    %741 = vmatpush1.msra.mxu0 0.0
    %742 = vmatprep.subr.mxu0 0.0
    %743 = vmatpush1.msra.mxu0 0.0
    %744 = vmatprep.subr.mxu0 0.0
    %745 = vmatpush1.msra.mxu0 0.0
    %746 = vmatprep.subr.mxu0 0.0
    %747 = vmatpush1.msra.mxu0 0.0
    %748 = vmatprep.subr.mxu0 0.0
    %749 = vmatpush1.msra.mxu0 0.0
    %750 = vmatprep.subr.mxu0 0.0
    %751 = vmatpush1.msra.mxu0 0.0
    %752 = vmatprep.subr.mxu0 0.0
    %753 = vmatpush1.msra.mxu0 0.0
    %754 = vmatprep.subr.mxu0 0.0
    %755 = vmatpush1.msra.mxu0 0.0
    %756 = vmatprep.subr.mxu0 0.0
    %757 = vmatpush1.msra.mxu0 0.0
    %758 = vmatprep.subr.mxu0 0.0
    %759 = vmatpush1.msra.mxu0 0.0
    %760 = vmatprep.subr.mxu0 0.0
    %761 = vmatpush1.msra.mxu0 0.0
    %762 = vmatprep.mubr.f32.mxu0 0.0
    %763 = vmatmul.mubr.f32.gmra.mrb[0].mxu0 %v696
    %v764 = vpop.f32.mrb[0].mxu0
    %v765 = vadd.f32 0.0, %v764
    %v766 = vpop.f32.mrb[0].mxu0
    %v767 = vadd.f32 0.0, %v766
    %768 = vdwg.mxu0
    %v771 = vrot.slane %v765, 6
    %v772 = vrot.slane %v767, 6
    %v775 = vadd.f32 %v691, %v771
    %v776 = vadd.f32 %v692, %v772
    %v777 = vtanh.pop %v775
    %v778 = vtanh.pop %v776
    %v779 = vmul.f32 %v777, %v165
    %v780 = vmul.f32 %v778, %v169
    %v781 = vadd.f32 %v779, %v177
    %v782 = vadd.f32 %v780, %v181
    %v784 = vrot.slane %v688, 6
    %v786 = vmul.f32 %v781, %v784
    %v787 = vmul.f32 %v781, %v782
    %789 = vrot.lane.b32.xlu0 %v787, 64
    %v790 = vpop.permute.xlu0 %789
    %v792 = vadd.f32 %v786, %v790
    %v793 = vtanh.pop %v792
    %v794 = vmul.f32 %v782, %v793
    %v795 = vld [vmem:[#allocation2 + $0x10] sm:$0x30]
    %v796 = vld [vmem:[#allocation2 + $0x18] sm:$0x30]
    %v798 = vrot.slane %v794, 2
    %799 = vrot.lane.b32.xlu0 %v798, 64
    %v800 = vpop.permute.xlu0 %799
    %v801 = vsel %vm186, %v800, 0
    %803 = vmatprep.subr.mxu0 %v145
    %804 = vmatpush1.msra.mxu0 %v144
    %805 = vmatprep.subr.mxu0 %v147
    %806 = vmatpush1.msra.mxu0 %v146
    %807 = vmatprep.subr.mxu0 %v149
    %808 = vmatpush1.msra.mxu0 %v148
    %809 = vmatprep.subr.mxu0 %v151
    %810 = vmatpush1.msra.mxu0 %v150
    %811 = vmatprep.subr.mxu0 %v153
    %812 = vmatpush1.msra.mxu0 %v152
    %813 = vmatprep.subr.mxu0 %v155
    %814 = vmatpush1.msra.mxu0 %v154
    %815 = vmatprep.subr.mxu0 %v157
    %816 = vmatpush1.msra.mxu0 %v156
    %817 = vmatprep.subr.mxu0 %v159
    %818 = vmatpush1.msra.mxu0 %v158
    %819 = vmatprep.subr.mxu0 0.0
    %820 = vmatpush1.msra.mxu0 0.0
    %821 = vmatprep.subr.mxu0 0.0
    %822 = vmatpush1.msra.mxu0 0.0
    %823 = vmatprep.subr.mxu0 0.0
    %824 = vmatpush1.msra.mxu0 0.0
    %825 = vmatprep.subr.mxu0 0.0
    %826 = vmatpush1.msra.mxu0 0.0
    %827 = vmatprep.subr.mxu0 0.0
    %828 = vmatpush1.msra.mxu0 0.0
    %829 = vmatprep.subr.mxu0 0.0
    %830 = vmatpush1.msra.mxu0 0.0
    %831 = vmatprep.subr.mxu0 0.0
    %832 = vmatpush1.msra.mxu0 0.0
    %833 = vmatprep.subr.mxu0 0.0
    %834 = vmatpush1.msra.mxu0 0.0
    %835 = vmatprep.subr.mxu0 0.0
    %836 = vmatpush1.msra.mxu0 0.0
    %837 = vmatprep.subr.mxu0 0.0
    %838 = vmatpush1.msra.mxu0 0.0
    %839 = vmatprep.subr.mxu0 0.0
    %840 = vmatpush1.msra.mxu0 0.0
    %841 = vmatprep.subr.mxu0 0.0
    %842 = vmatpush1.msra.mxu0 0.0
    %843 = vmatprep.subr.mxu0 0.0
    %844 = vmatpush1.msra.mxu0 0.0
    %845 = vmatprep.subr.mxu0 0.0
    %846 = vmatpush1.msra.mxu0 0.0
    %847 = vmatprep.subr.mxu0 0.0
    %848 = vmatpush1.msra.mxu0 0.0
    %849 = vmatprep.subr.mxu0 0.0
    %850 = vmatpush1.msra.mxu0 0.0
    %851 = vmatprep.subr.mxu0 0.0
    %852 = vmatpush1.msra.mxu0 0.0
    %853 = vmatprep.subr.mxu0 0.0
    %854 = vmatpush1.msra.mxu0 0.0
    %855 = vmatprep.subr.mxu0 0.0
    %856 = vmatpush1.msra.mxu0 0.0
    %857 = vmatprep.subr.mxu0 0.0
    %858 = vmatpush1.msra.mxu0 0.0
    %859 = vmatprep.subr.mxu0 0.0
    %860 = vmatpush1.msra.mxu0 0.0
    %861 = vmatprep.subr.mxu0 0.0
    %862 = vmatpush1.msra.mxu0 0.0
    %863 = vmatprep.subr.mxu0 0.0
    %864 = vmatpush1.msra.mxu0 0.0
    %865 = vmatprep.subr.mxu0 0.0
    %866 = vmatpush1.msra.mxu0 0.0
    %867 = vmatprep.mubr.f32.mxu0 0.0
    %868 = vmatmul.mubr.f32.gmra.mrb[0].mxu0 %v801
    %v869 = vpop.f32.mrb[0].mxu0
    %v870 = vadd.f32 0.0, %v869
    %v871 = vpop.f32.mrb[0].mxu0
    %v872 = vadd.f32 0.0, %v871
    %873 = vdwg.mxu0
    %v876 = vrot.slane %v870, 4
    %v877 = vrot.slane %v872, 4
    %v880 = vadd.f32 %v795, %v876
    %v881 = vadd.f32 %v796, %v877
    %v882 = vtanh.pop %v880
    %v883 = vtanh.pop %v881
    %v884 = vmul.f32 %v882, %v165
    %v885 = vmul.f32 %v883, %v169
    %v886 = vadd.f32 %v884, %v177
    %v887 = vadd.f32 %v885, %v181
    %v889 = vrot.slane %v792, 6
    %v891 = vmul.f32 %v886, %v889
    %v892 = vmul.f32 %v886, %v887
    %894 = vrot.lane.b32.xlu0 %v892, 64
    %v895 = vpop.permute.xlu0 %894
    %v897 = vadd.f32 %v891, %v895
    %v898 = vtanh.pop %v897
    %v899 = vmul.f32 %v887, %v898
    %v900 = vld [vmem:[#allocation2 + $0x10] sm:$0xc0]
    %v901 = vld [vmem:[#allocation2 + $0x18] sm:$0xc0]
    %v903 = vrot.slane %v899, 4
    %904 = vrot.lane.b32.xlu0 %v903, 64
    %v905 = vpop.permute.xlu0 %904
    %v906 = vsel %vm186, %v905, 0
    %908 = vmatprep.subr.mxu0 %v145
    %909 = vmatpush1.msra.mxu0 %v144
    %910 = vmatprep.subr.mxu0 %v147
    %911 = vmatpush1.msra.mxu0 %v146
    %912 = vmatprep.subr.mxu0 %v149
    %913 = vmatpush1.msra.mxu0 %v148
    %914 = vmatprep.subr.mxu0 %v151
    %915 = vmatpush1.msra.mxu0 %v150
    %916 = vmatprep.subr.mxu0 %v153
    %917 = vmatpush1.msra.mxu0 %v152
    %918 = vmatprep.subr.mxu0 %v155
    %919 = vmatpush1.msra.mxu0 %v154
    %920 = vmatprep.subr.mxu0 %v157
    %921 = vmatpush1.msra.mxu0 %v156
    %922 = vmatprep.subr.mxu0 %v159
    %923 = vmatpush1.msra.mxu0 %v158
    %924 = vmatprep.subr.mxu0 0.0
    %925 = vmatpush1.msra.mxu0 0.0
    %926 = vmatprep.subr.mxu0 0.0
    %927 = vmatpush1.msra.mxu0 0.0
    %928 = vmatprep.subr.mxu0 0.0
    %929 = vmatpush1.msra.mxu0 0.0
    %930 = vmatprep.subr.mxu0 0.0
    %931 = vmatpush1.msra.mxu0 0.0
    %932 = vmatprep.subr.mxu0 0.0
    %933 = vmatpush1.msra.mxu0 0.0
    %934 = vmatprep.subr.mxu0 0.0
    %935 = vmatpush1.msra.mxu0 0.0
    %936 = vmatprep.subr.mxu0 0.0
    %937 = vmatpush1.msra.mxu0 0.0
    %938 = vmatprep.subr.mxu0 0.0
    %939 = vmatpush1.msra.mxu0 0.0
    %940 = vmatprep.subr.mxu0 0.0
    %941 = vmatpush1.msra.mxu0 0.0
    %942 = vmatprep.subr.mxu0 0.0
    %943 = vmatpush1.msra.mxu0 0.0
    %944 = vmatprep.subr.mxu0 0.0
    %945 = vmatpush1.msra.mxu0 0.0
    %946 = vmatprep.subr.mxu0 0.0
    %947 = vmatpush1.msra.mxu0 0.0
    %948 = vmatprep.subr.mxu0 0.0
    %949 = vmatpush1.msra.mxu0 0.0
    %950 = vmatprep.subr.mxu0 0.0
    %951 = vmatpush1.msra.mxu0 0.0
    %952 = vmatprep.subr.mxu0 0.0
    %953 = vmatpush1.msra.mxu0 0.0
    %954 = vmatprep.subr.mxu0 0.0
    %955 = vmatpush1.msra.mxu0 0.0
    %956 = vmatprep.subr.mxu0 0.0
    %957 = vmatpush1.msra.mxu0 0.0
    %958 = vmatprep.subr.mxu0 0.0
    %959 = vmatpush1.msra.mxu0 0.0
    %960 = vmatprep.subr.mxu0 0.0
    %961 = vmatpush1.msra.mxu0 0.0
    %962 = vmatprep.subr.mxu0 0.0
    %963 = vmatpush1.msra.mxu0 0.0
    %964 = vmatprep.subr.mxu0 0.0
    %965 = vmatpush1.msra.mxu0 0.0
    %966 = vmatprep.subr.mxu0 0.0
    %967 = vmatpush1.msra.mxu0 0.0
    %968 = vmatprep.subr.mxu0 0.0
    %969 = vmatpush1.msra.mxu0 0.0
    %970 = vmatprep.subr.mxu0 0.0
    %971 = vmatpush1.msra.mxu0 0.0
    %972 = vmatprep.mubr.f32.mxu0 0.0
    %973 = vmatmul.mubr.f32.gmra.mrb[0].mxu0 %v906
    %v974 = vpop.f32.mrb[0].mxu0
    %v975 = vadd.f32 0.0, %v974
    %v976 = vpop.f32.mrb[0].mxu0
    %v977 = vadd.f32 0.0, %v976
    %978 = vdwg.mxu0
    %v981 = vrot.slane %v975, 2
    %v982 = vrot.slane %v977, 2
    %v985 = vadd.f32 %v900, %v981
    %v986 = vadd.f32 %v901, %v982
    %v987 = vtanh.pop %v985
    %v988 = vtanh.pop %v986
    %v989 = vmul.f32 %v987, %v165
    %v990 = vmul.f32 %v988, %v169
    %v991 = vadd.f32 %v989, %v177
    %v992 = vadd.f32 %v990, %v181
    %v994 = vrot.slane %v897, 6
    %v996 = vmul.f32 %v991, %v994
    %v997 = vmul.f32 %v991, %v992
    %999 = vrot.lane.b32.xlu0 %v997, 64
    %v1000 = vpop.permute.xlu0 %999
    %v1002 = vadd.f32 %v996, %v1000
    %v1003 = vtanh.pop %v1002
    %v1004 = vmul.f32 %v992, %v1003
    %v1007 = vrot.slane %v1004, 6
    %1008 = vrot.lane.b32.xlu0 %v1007, 64
    %v1009 = vpop.permute.xlu0 %1008
    %v1011 = vsel %vm56, %v282, %v1009
    %v1014 = vunpack.c.l.s4 1966171168
    %v1015 = vunpack.c.0.s8 %v1014
    %v1016 = vlaneseq
    %v1017 = vshrl.u32 %v1016, 7
    %v1018 = vsub.s32 %v1015, %v1017
    %v1019 = vrot.slane %v1011, %v1018
    %v1020 = vcombine.high %v1019, %v1019
    %v1022 = vunpack.c.l.s4 1966171168
    %v1023 = vunpack.c.0.s8 %v1022
    %v1024 = vlaneseq
    %v1025 = vshrl.u32 %v1024, 7
    %v1026 = vsub.s32 %v1023, %v1025
    %v1027 = vrot.slane %v1019, %v1026
    %v1029 = vunpack.c.l.s4 1966171168
    %v1030 = vunpack.c.0.s8 %v1029
    %v1031 = vlaneseq
    %v1032 = vshrl.u32 %v1031, 7
    %v1033 = vsub.s32 %v1030, %v1032
    %v1034 = vrot.slane %v1020, %v1033
    %vm1037 = vcmask 516096
    %1038 = vst.msk [vmem:[#allocation4] sm:$0x1] %vm1037, %v1027
    %1039 = vst.msk [vmem:[#allocation4 + $0x8] sm:$0x1] %vm1037, %v1034
    %1040 = vrot.lane.b32.xlu0 %v381, 64
    %v1041 = vpop.permute.xlu0 %1040
    %v1043 = vrot.slane %v899, 2
    %1044 = vrot.lane.b32.xlu0 %v1043, 64
    %v1045 = vpop.permute.xlu0 %1044
    %v1047 = vsel %vm56, %v1041, %v1045
    %v1050 = vunpack.c.l.s4 1966171168
    %v1051 = vunpack.c.0.s8 %v1050
    %v1052 = vlaneseq
    %v1053 = vshrl.u32 %v1052, 7
    %v1054 = vsub.s32 %v1051, %v1053
    %v1055 = vrot.slane %v1047, %v1054
    %v1056 = vcombine.high %v1055, %v1055
    %v1058 = vunpack.c.l.s4 1966171168
    %v1059 = vunpack.c.0.s8 %v1058
    %v1060 = vlaneseq
    %v1061 = vshrl.u32 %v1060, 7
    %v1062 = vsub.s32 %v1059, %v1061
    %v1063 = vrot.slane %v1055, %v1062
    %v1065 = vunpack.c.l.s4 1966171168
    %v1066 = vunpack.c.0.s8 %v1065
    %v1067 = vlaneseq
    %v1068 = vshrl.u32 %v1067, 7
    %v1069 = vsub.s32 %v1066, %v1068
    %v1070 = vrot.slane %v1056, %v1069
    %v1071 = vcombine.high %v1063, %v1063
    %v1072 = vcombine.high %v1070, %v1070
    %1075 = vst.msk [vmem:[#allocation4 + $0x1] sm:$0x1] %vm1037, %v1071
    %1076 = vst.msk [vmem:[#allocation4 + $0x9] sm:$0x1] %vm1037, %v1072
    %1077 = vrot.lane.b32.xlu0 %v486, 64
    %v1078 = vpop.permute.xlu0 %1077
    %v1080 = vrot.slane %v794, 6
    %1081 = vrot.lane.b32.xlu0 %v1080, 64
    %v1082 = vpop.permute.xlu0 %1081
    %v1084 = vsel %vm56, %v1078, %v1082
    %v1086 = vcombine.high %v1084, %v1084
    %v1088 = vunpack.c.l.s4 1966171168
    %v1089 = vunpack.c.0.s8 %v1088
    %v1090 = vlaneseq
    %v1091 = vshrl.u32 %v1090, 7
    %v1092 = vsub.s32 %v1089, %v1091
    %v1093 = vrot.slane %v1086, %v1092
    %v1094 = vcombine.high %v1093, %v1093
    %v1096 = vunpack.c.l.s4 1966171168
    %v1097 = vunpack.c.0.s8 %v1096
    %v1098 = vlaneseq
    %v1099 = vshrl.u32 %v1098, 7
    %v1100 = vsub.s32 %v1097, %v1099
    %v1101 = vrot.slane %v1093, %v1100
    %v1103 = vunpack.c.l.s4 1966171168
    %v1104 = vunpack.c.0.s8 %v1103
    %v1105 = vlaneseq
    %v1106 = vshrl.u32 %v1105, 7
    %v1107 = vsub.s32 %v1104, %v1106
    %v1108 = vrot.slane %v1094, %v1107
    %1111 = vst.msk [vmem:[#allocation4 + $0x2] sm:$0x1] %vm1037, %v1101
    %1112 = vst.msk [vmem:[#allocation4 + $0xa] sm:$0x1] %vm1037, %v1108
    %1113 = vrot.lane.b32.xlu0 %v591, 64
    %v1114 = vpop.permute.xlu0 %1113
    %v1116 = vrot.slane %v690, 2
    %1117 = vrot.lane.b32.xlu0 %v1116, 64
    %v1118 = vpop.permute.xlu0 %1117
    %v1120 = vsel %vm56, %v1114, %v1118
    %v1122 = vcombine.high %v1120, %v1120
    %v1124 = vunpack.c.l.s4 1966171168
    %v1125 = vunpack.c.0.s8 %v1124
    %v1126 = vlaneseq
    %v1127 = vshrl.u32 %v1126, 7
    %v1128 = vsub.s32 %v1125, %v1127
    %v1129 = vrot.slane %v1122, %v1128
    %v1130 = vcombine.high %v1129, %v1129
    %v1132 = vunpack.c.l.s4 1966171168
    %v1133 = vunpack.c.0.s8 %v1132
    %v1134 = vlaneseq
    %v1135 = vshrl.u32 %v1134, 7
    %v1136 = vsub.s32 %v1133, %v1135
    %v1137 = vrot.slane %v1129, %v1136
    %v1139 = vunpack.c.l.s4 1966171168
    %v1140 = vunpack.c.0.s8 %v1139
    %v1141 = vlaneseq
    %v1142 = vshrl.u32 %v1141, 7
    %v1143 = vsub.s32 %v1140, %v1142
    %v1144 = vrot.slane %v1130, %v1143
    %v1145 = vcombine.high %v1137, %v1137
    %v1146 = vcombine.high %v1144, %v1144
    %1149 = vst.msk [vmem:[#allocation4 + $0x3] sm:$0x1] %vm1037, %v1145
    %1150 = vst.msk [vmem:[#allocation4 + $0xb] sm:$0x1] %vm1037, %v1146
    %v1153 = vsel %vm56, %v695, %v597
    %v1156 = vunpack.c.l.s4 1966171168
    %v1157 = vunpack.c.0.s8 %v1156
    %v1158 = vlaneseq
    %v1159 = vshrl.u32 %v1158, 7
    %v1160 = vsub.s32 %v1157, %v1159
    %v1161 = vrot.slane %v1153, %v1160
    %v1162 = vcombine.high %v1161, %v1161
    %v1164 = vunpack.c.l.s4 1966171168
    %v1165 = vunpack.c.0.s8 %v1164
    %v1166 = vlaneseq
    %v1167 = vshrl.u32 %v1166, 7
    %v1168 = vsub.s32 %v1165, %v1167
    %v1169 = vrot.slane %v1161, %v1168
    %v1171 = vunpack.c.l.s4 1966171168
    %v1172 = vunpack.c.0.s8 %v1171
    %v1173 = vlaneseq
    %v1174 = vshrl.u32 %v1173, 7
    %v1175 = vsub.s32 %v1172, %v1174
    %v1176 = vrot.slane %v1162, %v1175
    %1179 = vst.msk [vmem:[#allocation4 + $0x4] sm:$0x1] %vm1037, %v1169
    %1180 = vst.msk [vmem:[#allocation4 + $0xc] sm:$0x1] %vm1037, %v1176
    %1181 = vrot.lane.b32.xlu0 %v794, 64
    %v1182 = vpop.permute.xlu0 %1181
    %v1184 = vrot.slane %v486, 2
    %1185 = vrot.lane.b32.xlu0 %v1184, 64
    %v1186 = vpop.permute.xlu0 %1185
    %v1188 = vsel %vm56, %v1182, %v1186
    %v1191 = vunpack.c.l.s4 1966171168
    %v1192 = vunpack.c.0.s8 %v1191
    %v1193 = vlaneseq
    %v1194 = vshrl.u32 %v1193, 7
    %v1195 = vsub.s32 %v1192, %v1194
    %v1196 = vrot.slane %v1188, %v1195
    %v1197 = vcombine.high %v1196, %v1196
    %v1199 = vunpack.c.l.s4 1966171168
    %v1200 = vunpack.c.0.s8 %v1199
    %v1201 = vlaneseq
    %v1202 = vshrl.u32 %v1201, 7
    %v1203 = vsub.s32 %v1200, %v1202
    %v1204 = vrot.slane %v1196, %v1203
    %v1206 = vunpack.c.l.s4 1966171168
    %v1207 = vunpack.c.0.s8 %v1206
    %v1208 = vlaneseq
    %v1209 = vshrl.u32 %v1208, 7
    %v1210 = vsub.s32 %v1207, %v1209
    %v1211 = vrot.slane %v1197, %v1210
    %v1212 = vcombine.high %v1204, %v1204
    %v1213 = vcombine.high %v1211, %v1211
    %1216 = vst.msk [vmem:[#allocation4 + $0x5] sm:$0x1] %vm1037, %v1212
    %1217 = vst.msk [vmem:[#allocation4 + $0xd] sm:$0x1] %vm1037, %v1213
    %1218 = vrot.lane.b32.xlu0 %v899, 64
    %v1219 = vpop.permute.xlu0 %1218
    %v1221 = vrot.slane %v381, 6
    %1222 = vrot.lane.b32.xlu0 %v1221, 64
    %v1223 = vpop.permute.xlu0 %1222
    %v1225 = vsel %vm56, %v1219, %v1223
    %v1227 = vcombine.high %v1225, %v1225
    %v1229 = vunpack.c.l.s4 1966171168
    %v1230 = vunpack.c.0.s8 %v1229
    %v1231 = vlaneseq
    %v1232 = vshrl.u32 %v1231, 7
    %v1233 = vsub.s32 %v1230, %v1232
    %v1234 = vrot.slane %v1227, %v1233
    %v1235 = vcombine.high %v1234, %v1234
    %v1237 = vunpack.c.l.s4 1966171168
    %v1238 = vunpack.c.0.s8 %v1237
    %v1239 = vlaneseq
    %v1240 = vshrl.u32 %v1239, 7
    %v1241 = vsub.s32 %v1238, %v1240
    %v1242 = vrot.slane %v1234, %v1241
    %v1244 = vunpack.c.l.s4 1966171168
    %v1245 = vunpack.c.0.s8 %v1244
    %v1246 = vlaneseq
    %v1247 = vshrl.u32 %v1246, 7
    %v1248 = vsub.s32 %v1245, %v1247
    %v1249 = vrot.slane %v1235, %v1248
    %1252 = vst.msk [vmem:[#allocation4 + $0x6] sm:$0x1] %vm1037, %v1242
    %1253 = vst.msk [vmem:[#allocation4 + $0xe] sm:$0x1] %vm1037, %v1249
    %1254 = vrot.lane.b32.xlu0 %v1004, 64
    %v1255 = vpop.permute.xlu0 %1254
    %v1257 = vrot.slane %v277, 2
    %1258 = vrot.lane.b32.xlu0 %v1257, 64
    %v1259 = vpop.permute.xlu0 %1258
    %v1261 = vsel %vm56, %v1255, %v1259
    %v1263 = vcombine.high %v1261, %v1261
    %v1265 = vunpack.c.l.s4 1966171168
    %v1266 = vunpack.c.0.s8 %v1265
    %v1267 = vlaneseq
    %v1268 = vshrl.u32 %v1267, 7
    %v1269 = vsub.s32 %v1266, %v1268
    %v1270 = vrot.slane %v1263, %v1269
    %v1271 = vcombine.high %v1270, %v1270
    %v1273 = vunpack.c.l.s4 1966171168
    %v1274 = vunpack.c.0.s8 %v1273
    %v1275 = vlaneseq
    %v1276 = vshrl.u32 %v1275, 7
    %v1277 = vsub.s32 %v1274, %v1276
    %v1278 = vrot.slane %v1270, %v1277
    %v1280 = vunpack.c.l.s4 1966171168
    %v1281 = vunpack.c.0.s8 %v1280
    %v1282 = vlaneseq
    %v1283 = vshrl.u32 %v1282, 7
    %v1284 = vsub.s32 %v1281, %v1283
    %v1285 = vrot.slane %v1271, %v1284
    %v1286 = vcombine.high %v1278, %v1278
    %v1287 = vcombine.high %v1285, %v1285
    %1290 = vst.msk [vmem:[#allocation4 + $0x7] sm:$0x1] %vm1037, %v1286
    %1291 = vst.msk [vmem:[#allocation4 + $0xf] sm:$0x1] %vm1037, %v1287
    %v1292 = vld [vmem:[%s6] sm:$0xff]
    %v1293 = vld [vmem:[%s6 + $0x8] sm:$0xff]
    %v1294 = vld [vmem:[%s6 + $0x10] sm:$0xff]
    %v1295 = vld [vmem:[%s6 + $0x18] sm:$0xff]
    %v1296 = vld [vmem:[%s6 + $0x20] sm:$0xff]
    %v1297 = vld [vmem:[%s6 + $0x28] sm:$0xff]
    %v1298 = vld [vmem:[%s6 + $0x30] sm:$0xff]
    %v1299 = vld [vmem:[%s6 + $0x38] sm:$0xff]
    %v1300 = vld [vmem:[#allocation3] sm:$0x1]
    %v1302 = vlaneseq
    %v1303 = vshrl.u32 %v1302, 7
    %v1304 = vsub.s32 0, %v1303
    %v1305 = vrot.slane %v1300, %v1304
    %v1307 = vrot.slane %v1261, 6
    %v1308 = vsel %vm186, %v1307, 0
    %1310 = vmatprep.subr.mxu0 0.0
    %1311 = vmatpush1.msra.mxu0 %v1292
    %1312 = vmatprep.subr.mxu0 0.0
    %1313 = vmatpush1.msra.mxu0 %v1293
    %1314 = vmatprep.subr.mxu0 0.0
    %1315 = vmatpush1.msra.mxu0 %v1294
    %1316 = vmatprep.subr.mxu0 0.0
    %1317 = vmatpush1.msra.mxu0 %v1295
    %1318 = vmatprep.subr.mxu0 0.0
    %1319 = vmatpush1.msra.mxu0 %v1296
    %1320 = vmatprep.subr.mxu0 0.0
    %1321 = vmatpush1.msra.mxu0 %v1297
    %1322 = vmatprep.subr.mxu0 0.0
    %1323 = vmatpush1.msra.mxu0 %v1298
    %1324 = vmatprep.subr.mxu0 0.0
    %1325 = vmatpush1.msra.mxu0 %v1299
    %1326 = vmatprep.subr.mxu0 0.0
    %1327 = vmatpush1.msra.mxu0 0.0
    %1328 = vmatprep.subr.mxu0 0.0
    %1329 = vmatpush1.msra.mxu0 0.0
    %1330 = vmatprep.subr.mxu0 0.0
    %1331 = vmatpush1.msra.mxu0 0.0
    %1332 = vmatprep.subr.mxu0 0.0
    %1333 = vmatpush1.msra.mxu0 0.0
    %1334 = vmatprep.subr.mxu0 0.0
    %1335 = vmatpush1.msra.mxu0 0.0
    %1336 = vmatprep.subr.mxu0 0.0
    %1337 = vmatpush1.msra.mxu0 0.0
    %1338 = vmatprep.subr.mxu0 0.0
    %1339 = vmatpush1.msra.mxu0 0.0
    %1340 = vmatprep.subr.mxu0 0.0
    %1341 = vmatpush1.msra.mxu0 0.0
    %1342 = vmatprep.subr.mxu0 0.0
    %1343 = vmatpush1.msra.mxu0 0.0
    %1344 = vmatprep.subr.mxu0 0.0
    %1345 = vmatpush1.msra.mxu0 0.0
    %1346 = vmatprep.subr.mxu0 0.0
    %1347 = vmatpush1.msra.mxu0 0.0
    %1348 = vmatprep.subr.mxu0 0.0
    %1349 = vmatpush1.msra.mxu0 0.0
    %1350 = vmatprep.subr.mxu0 0.0
    %1351 = vmatpush1.msra.mxu0 0.0
    %1352 = vmatprep.subr.mxu0 0.0
    %1353 = vmatpush1.msra.mxu0 0.0
    %1354 = vmatprep.subr.mxu0 0.0
    %1355 = vmatpush1.msra.mxu0 0.0
    %1356 = vmatprep.subr.mxu0 0.0
    %1357 = vmatpush1.msra.mxu0 0.0
    %1358 = vmatprep.subr.mxu0 0.0
    %1359 = vmatpush1.msra.mxu0 0.0
    %1360 = vmatprep.subr.mxu0 0.0
    %1361 = vmatpush1.msra.mxu0 0.0
    %1362 = vmatprep.subr.mxu0 0.0
    %1363 = vmatpush1.msra.mxu0 0.0
    %1364 = vmatprep.subr.mxu0 0.0
    %1365 = vmatpush1.msra.mxu0 0.0
    %1366 = vmatprep.subr.mxu0 0.0
    %1367 = vmatpush1.msra.mxu0 0.0
    %1368 = vmatprep.subr.mxu0 0.0
    %1369 = vmatpush1.msra.mxu0 0.0
    %1370 = vmatprep.subr.mxu0 0.0
    %1371 = vmatpush1.msra.mxu0 0.0
    %1372 = vmatprep.subr.mxu0 0.0
    %1373 = vmatpush1.msra.mxu0 0.0
    %1374 = vmatprep.mubr.f32.mxu0 0.0
    %1375 = vmatmul.mubr.f32.gmra.mrb[0].mxu0 %v1308
    %v1376 = vpop.f32.mrb[0].mxu0
    %v1377 = vadd.f32 %v1305, %v1376
    %v1378 = vpop.f32.mrb[0].mxu0
    %1379 = vdwg.mxu0
    %v1380 = vmul.f32 %v1377, 0.5
    %v1381 = vtanh.pop %v1380
    %v1382 = vmul.f32 %v1381, 0.5
    %v1383 = vadd.f32 %v1382, 0.5
    %vm1384 = vcmask 1024
    %1385 = vst.msk [vmem:[%s9] sm:$0x3] %vm1384, %v1383
    // Predicated region
    $region34: #{bilstm_forward.1} parent=1 // pred_check
      _
    $region35: #{bilstm_forward.1} parent=1 // pred_check_branch
      %1387 = sbr.rel (0) target = $region37
    $region36: #{bilstm_forward.1} parent=1 // pred_region
      %s1389 = ssub.s32 256, 256
      %1390 = vsyncadd [#allocation5], %s1389
      %s1391 = sshll.u32 [#allocation4], 4
      %s1392 = int_to_ptr.vmem [resolvable:$true] %s1391
      %1397 = dma.vmem_to_hbm [thread:$0]  %s1392, 256, %s8, [#allocation5], 128, 128, 8
    $region37: #{bilstm_forward.1} parent=1 // pred_fallthru
      _
    // Predicated region
    $region38: #{bilstm_forward.1} parent=1 // pred_check
      _
    $region39: #{bilstm_forward.1} parent=1 // pred_check_branch
      %1399 = sbr.rel (0) target = $region41
    $region40: #{bilstm_forward.1} parent=1 // pred_region
      _
    $region41: #{bilstm_forward.1} parent=1 // pred_fallthru
      _
    // Predicated region
    $region42: #{bilstm_forward.1} parent=1 // pred_check
      _
    $region43: #{bilstm_forward.1} parent=1 // pred_check_branch
      %1401 = sbr.rel (0) target = $region45
    $region44: #{bilstm_forward.1} parent=1 // pred_region
      %1402 = dma.done [#allocation5], 256
    $region45: #{bilstm_forward.1} parent=1 // pred_fallthru
      _
    // Predicated region
    $region46: #{bilstm_forward.1} parent=1 // pred_check
      _
    $region47: #{bilstm_forward.1} parent=1 // pred_check_branch
      %1404 = sbr.rel (0) target = $region49
    $region48: #{bilstm_forward.1} parent=1 // pred_region
      _
    $region49: #{bilstm_forward.1} parent=1 // pred_fallthru
      _
    %1405 = vsyncpa [#allocation5], 1

</llo_original>
